<compile_context>
chip_gen: v7x
topology: tpu7x:2x2x1
jax: 0.10.0
libtpu: 0.0.40
codegen_flags: <defaults>
</compile_context>

<pallas_src>
import functools

import numpy as np

import jax
import jax.numpy as jnp
from jax.experimental import pallas as pl
from jax.experimental.pallas import tpu as pltpu


def _round_up(x, m):
    return (x + m - 1) // m * m


def cc_head_kernel(rep_ref, wb_ref, bb_ref, wht_ref, wpct_ref, bct_ref,
                   out_ref, *, n_labels):
    # ---- base MLP: h0 = relu(rep @ Wb + bb) ------------------------- (tb, H)
    # Matmul operands stay in their native dtype (bf16-friendly on the MXU);
    # accumulation, bias and ReLU in f32.
    h0 = jnp.maximum(
        jnp.dot(rep_ref[...], wb_ref[...], preferred_element_type=jnp.float32)
        + bb_ref[...].astype(jnp.float32),
        0.0)

    # ---- base logits for every classifier, transposed ---------------- (L, tb)
    # acc_t[l, b] = <h0[b, :], w_l[:hidden]> + b_l   (NT matmul, f32 accumulate).
    # Labels live on sublanes, batch on lanes -> the whole chain below is
    # lane-dense.
    acc_t = jax.lax.dot_general(
        wht_ref[...], h0.astype(wht_ref.dtype),
        dimension_numbers=(((1,), (1,)), ((), ())),
        preferred_element_type=jnp.float32)
    acc_t = acc_t + bct_ref[...].astype(jnp.float32)

    # ---- classifier chain: forward accumulation in transposed layout --------
    # Row j of acc_t is final once steps 0..j-1 have run (wpct[l, j] == 0 for
    # l <= j).  Each step: one lane-dense sigmoid (EUP), one outer-product FMA
    # (VPU), with the per-step weight column loaded straight from the ref so
    # vreg pressure stays flat.  Chain math stays in f32.
    # TODO(synk): for n_labels >~ 128, block the chain (scalar updates inside a
    # 64-128 label block, then one MXU matmul probs_block @ wpct[block, later:])
    # and drive it with lax.fori_loop instead of a full unroll.
    for j in range(n_labels - 1):
        prob_j = jax.nn.sigmoid(acc_t[j:j + 1, :])        # (1, tb) lane-dense
        acc_t = acc_t + wpct_ref[:, j:j + 1] * prob_j     # (L,1)*(1,tb) FMA

    out_ref[...] = acc_t.astype(out_ref.dtype)            # lane-dense store


def pack_cc_head_params(cls_w, cls_b, *, hidden, n_labels, lane_width=128,
                        matmul_dtype=jnp.float32):
    """Pack per-label Linear(hidden + i -> 1) params for the transposed kernel.

    Returns
      wht  : (L, hidden)    wht[l, :]  = cls_w[l][:hidden]
      wpct : (L, n_labels)  wpct[l, j] = cls_w[l][hidden + j]  (j < l), else 0
      bct  : (L, 1)         bct[l, 0]  = cls_b[l]
    with L = n_labels rounded up to `lane_width` so the kernel's output stays
    lane-padded.  `matmul_dtype` may be bf16 for the MXU weight (wht); chain
    weights and biases stay f32.
    """
    L = _round_up(max(n_labels, 1), lane_width)
    wht = jnp.zeros((L, hidden), matmul_dtype)
    wpct = jnp.zeros((L, n_labels), jnp.float32)
    bct = jnp.zeros((L, 1), jnp.float32)
    for i in range(n_labels):
        wht = wht.at[i, :].set(cls_w[i][:hidden].astype(matmul_dtype))
        bct = bct.at[i, 0].set(cls_b[i])
        if i > 0:
            wpct = wpct.at[i, :i].set(cls_w[i][hidden:])
    return wht, wpct, bct


def cc_head(rep, wb, bb, wht, wpct, bct, *, n_labels, block_b=256,
            out_dtype=jnp.float32):
    """CCHead forward: logits (B, n_labels) in `out_dtype` from rep (B, rep_dim)."""
    B, rep_dim = rep.shape
    L, hidden = wht.shape

    # --- batch tile -----------------------------------------------------------
    # The kernel output is transposed (batch on the lane axis), so tb must be a
    # multiple of 128 unless it covers the whole (8-padded) batch.  block_b=256
    # keeps the f32 (L, tb) chain accumulator at ~half the vreg file (no
    # spills); when B > 128 we force >= 2 grid steps so the "parallel" batch
    # axis can shard across both v7x TensorCores.
    if B <= 128:
        tb = _round_up(max(B, 1), 8)
    else:
        half = _round_up(-(-B // 2), 128)
        tb = max(128, min(_round_up(block_b, 128), half))
    b_pad = _round_up(B, tb)
    if b_pad != B:
        rep = jnp.pad(rep, ((0, b_pad - B), (0, 0)))

    # --- VMEM budget & cost hint ----------------------------------------------
    def nbytes(a):
        return int(a.size) * a.dtype.itemsize

    out_itemsize = np.dtype(out_dtype).itemsize
    weight_bytes = sum(nbytes(a) for a in (wb, bb, wht, wpct, bct))
    stream_bytes = 2 * (tb * rep_dim * rep.dtype.itemsize
                        + L * tb * out_itemsize)
    vmem_limit = int(min(max(2 * weight_bytes + stream_bytes + (8 << 20),
                             32 << 20),
                         128 << 20))
    cost = pl.CostEstimate(
        flops=int(2 * B * rep_dim * hidden + 2 * B * hidden * L
                  + 2 * B * max(n_labels - 1, 0) * L),
        transcendentals=int(B * max(n_labels - 1, 0)),
        bytes_accessed=int(B * rep_dim * rep.dtype.itemsize + weight_bytes
                           + L * b_pad * out_itemsize))

    def build(single_buffer_weights):
        def weight_spec(shape):
            if single_buffer_weights:
                # Constant index_map -> the block never changes; single-buffer
                # it to halve the resident-weight VMEM footprint (v7x: 64 MiB).
                return pl.BlockSpec(shape, lambda i: (0, 0),
                                    pipeline_mode=pl.Buffered(1))
            return pl.BlockSpec(shape, lambda i: (0, 0))

        return pl.pallas_call(
            functools.partial(cc_head_kernel, n_labels=n_labels),
            grid=(b_pad // tb,),
            in_specs=[
                pl.BlockSpec((tb, rep_dim), lambda i: (i, 0)),  # streamed input
                weight_spec(wb.shape),                          # resident weights
                weight_spec(bb.shape),
                weight_spec(wht.shape),
                weight_spec(wpct.shape),
                weight_spec(bct.shape),
            ],
            out_specs=pl.BlockSpec((L, tb), lambda i: (0, i)),  # transposed out
            out_shape=jax.ShapeDtypeStruct((L, b_pad), out_dtype),
            compiler_params=pltpu.CompilerParams(
                dimension_semantics=("parallel",),              # megacore on v7x
                vmem_limit_bytes=vmem_limit),
            cost_estimate=cost,
        )

    try:
        out_t = jax.block_until_ready(
            build(True)(rep, wb, bb, wht, wpct, bct))
    except Exception:
        # pl.Buffered(1) single-buffering of the resident weights may not be
        # supported by every Pallas/Mosaic build; fall back to the default
        # double-buffered weight specs (correctness is identical).
        out_t = build(False)(rep, wb, bb, wht, wpct, bct)

    # out_t[l, b] = logit_l for batch row b; transposing the tiny real slice
    # back in the wrapper is layout plumbing, not compute.
    return out_t[:n_labels, :B].T


if __name__ == "__main__":
    B, rep_dim, hidden, n_labels = 4, 16, 32, 8

    root = jax.random.PRNGKey(0)
    keys = jax.random.split(root, 3 + 2 * n_labels)

    # input
    rep = jax.random.normal(keys[0], (B, rep_dim), jnp.float32)

    # base Linear(rep_dim -> hidden): stored input-major (in, out)
    wb = 0.1 * jax.random.normal(keys[1], (rep_dim, hidden), jnp.float32)
    bb = 0.1 * jax.random.normal(keys[2], (1, hidden), jnp.float32)

    # cls_layers[i]: Linear(hidden + i -> 1)
    cls_w = [0.1 * jax.random.normal(keys[3 + 2 * i], (hidden + i,), jnp.float32)
             for i in range(n_labels)]
    cls_b = jnp.stack(
        [0.1 * jax.random.normal(keys[4 + 2 * i], (), jnp.float32)
         for i in range(n_labels)])

    # NOTE: at production sizes pass matmul_dtype=jnp.bfloat16 (and feed rep /
    # wb as bf16) to run the MXU at full rate; chain math stays f32 either way.
    wht, wpct, bct = pack_cc_head_params(cls_w, cls_b, hidden=hidden,
                                         n_labels=n_labels)

    out = cc_head(rep, wb, bb, wht, wpct, bct, n_labels=n_labels)
    out = jax.block_until_ready(out)

    # Pure-JAX reference mirroring the torch forward loop exactly.
    h0 = jnp.maximum(rep @ wb + bb, 0.0)
    logits, probs = [], []
    for i in range(n_labels):
        h = h0 if i == 0 else jnp.concatenate([h0] + probs, axis=1)
        logit = h @ cls_w[i].reshape(-1, 1) + cls_b[i]
        logits.append(logit)
        probs.append(jax.nn.sigmoid(logit))
    ref = jnp.concatenate(logits, axis=1)

    assert out.shape == (B, n_labels), out.shape
    assert out.dtype == jnp.float32, out.dtype
    assert jnp.allclose(out, ref, rtol=1e-5, atol=1e-5), (out, ref)
    print("KERNEL_OK")
</pallas_src>

<mosaic_0001>
module attributes {stable_mosaic.version = 11 : i64} {
  func.func @cc_head_kernel(%arg0: i32, %arg1: memref<8x16xf32, #tpu.memory_space<vmem>>, %arg2: memref<16x32xf32, #tpu.memory_space<vmem>>, %arg3: memref<1x32xf32, #tpu.memory_space<vmem>>, %arg4: memref<128x32xf32, #tpu.memory_space<vmem>>, %arg5: memref<128x8xf32, #tpu.memory_space<vmem>>, %arg6: memref<128x1xf32, #tpu.memory_space<vmem>>, %arg7: memref<128x8xf32, #tpu.memory_space<vmem>>) attributes {dimension_semantics = [#tpu.dimension_semantics<parallel>], iteration_bounds = array<i64: 1>, scalar_prefetch = 0 : i64, scratch_operands = 0 : i64, tpu.core_type = #tpu.core_type<tc>, window_params = [{transform_indices = @transform_0, window_bounds = array<i64: 8, 16>}, {pipeline_mode = #tpu.pipeline_mode<synchronous>, transform_indices = @transform_1, window_bounds = array<i64: 16, 32>}, {pipeline_mode = #tpu.pipeline_mode<synchronous>, transform_indices = @transform_2, window_bounds = array<i64: 1, 32>}, {pipeline_mode = #tpu.pipeline_mode<synchronous>, transform_indices = @transform_3, window_bounds = array<i64: 128, 32>}, {pipeline_mode = #tpu.pipeline_mode<synchronous>, transform_indices = @transform_4, window_bounds = array<i64: 128, 8>}, {pipeline_mode = #tpu.pipeline_mode<synchronous>, transform_indices = @transform_5, window_bounds = array<i64: 128, 1>}, {transform_indices = @transform_6, window_bounds = array<i64: 128, 8>}]} {
    %c0 = arith.constant 0 : index
    %c0_0 = arith.constant 0 : index
    %0 = vector.load %arg1[%c0, %c0_0] : memref<8x16xf32, #tpu.memory_space<vmem>>, vector<8x16xf32>
    %c0_1 = arith.constant 0 : index
    %c0_2 = arith.constant 0 : index
    %1 = vector.load %arg2[%c0_1, %c0_2] : memref<16x32xf32, #tpu.memory_space<vmem>>, vector<16x32xf32>
    %cst = arith.constant dense<0.000000e+00> : vector<8x32xf32>
    %2 = tpu.matmul %0, %1, %cst {dimension_numbers = #tpu.dot_dimension_numbers<[1], [0], [0], [1], [0, 0, 1, 1], [], []>} : vector<8x16xf32>, vector<16x32xf32>, vector<8x32xf32> -> vector<8x32xf32>
    %c0_3 = arith.constant 0 : index
    %c0_4 = arith.constant 0 : index
    %3 = vector.load %arg3[%c0_3, %c0_4] : memref<1x32xf32, #tpu.memory_space<vmem>>, vector<1x32xf32>
    %4 = vector.broadcast %3 : vector<1x32xf32> to vector<8x32xf32>
    %5 = arith.addf %2, %4 : vector<8x32xf32>
    %cst_5 = arith.constant 0.000000e+00 : f32
    %6 = vector.broadcast %cst_5 : f32 to vector<8x32xf32>
    %7 = arith.maximumf %5, %6 : vector<8x32xf32>
    %c0_6 = arith.constant 0 : index
    %c0_7 = arith.constant 0 : index
    %8 = vector.load %arg4[%c0_6, %c0_7] : memref<128x32xf32, #tpu.memory_space<vmem>>, vector<128x32xf32>
    %cst_8 = arith.constant dense<0.000000e+00> : vector<128x8xf32>
    %9 = tpu.matmul %8, %7, %cst_8 {dimension_numbers = #tpu.dot_dimension_numbers<[1], [1], [0], [0], [0, 0, 1, 0], [], []>} : vector<128x32xf32>, vector<8x32xf32>, vector<128x8xf32> -> vector<128x8xf32>
    %c0_9 = arith.constant 0 : index
    %c0_10 = arith.constant 0 : index
    %10 = vector.load %arg6[%c0_9, %c0_10] : memref<128x1xf32, #tpu.memory_space<vmem>>, vector<128x1xf32>
    %11 = vector.broadcast %10 : vector<128x1xf32> to vector<128x8xf32>
    %12 = arith.addf %9, %11 : vector<128x8xf32>
    %13 = vector.extract_strided_slice %12 {offsets = [0, 0], sizes = [1, 8], strides = [1, 1]} : vector<128x8xf32> to vector<1x8xf32>
    %14 = arith.negf %13 : vector<1x8xf32>
    %15 = math.exp %14 : vector<1x8xf32>
    %cst_11 = arith.constant 1.000000e+00 : f32
    %16 = vector.broadcast %cst_11 : f32 to vector<1x8xf32>
    %17 = arith.addf %16, %15 : vector<1x8xf32>
    %18 = arith.divf %16, %17 : vector<1x8xf32>
    %c0_12 = arith.constant 0 : index
    %c0_13 = arith.constant 0 : index
    %19 = vector.load %arg5[%c0_12, %c0_13] : memref<128x8xf32, #tpu.memory_space<vmem>>, vector<128x1xf32>
    %20 = vector.broadcast %19 : vector<128x1xf32> to vector<128x8xf32>
    %21 = vector.broadcast %18 : vector<1x8xf32> to vector<128x8xf32>
    %22 = arith.mulf %20, %21 : vector<128x8xf32>
    %23 = arith.addf %12, %22 : vector<128x8xf32>
    %24 = vector.extract_strided_slice %23 {offsets = [1, 0], sizes = [1, 8], strides = [1, 1]} : vector<128x8xf32> to vector<1x8xf32>
    %25 = arith.negf %24 : vector<1x8xf32>
    %26 = math.exp %25 : vector<1x8xf32>
    %cst_14 = arith.constant 1.000000e+00 : f32
    %27 = vector.broadcast %cst_14 : f32 to vector<1x8xf32>
    %28 = arith.addf %27, %26 : vector<1x8xf32>
    %29 = arith.divf %27, %28 : vector<1x8xf32>
    %c0_15 = arith.constant 0 : index
    %c1 = arith.constant 1 : index
    %30 = vector.load %arg5[%c0_15, %c1] : memref<128x8xf32, #tpu.memory_space<vmem>>, vector<128x1xf32>
    %31 = vector.broadcast %30 : vector<128x1xf32> to vector<128x8xf32>
    %32 = vector.broadcast %29 : vector<1x8xf32> to vector<128x8xf32>
    %33 = arith.mulf %31, %32 : vector<128x8xf32>
    %34 = arith.addf %23, %33 : vector<128x8xf32>
    %35 = vector.extract_strided_slice %34 {offsets = [2, 0], sizes = [1, 8], strides = [1, 1]} : vector<128x8xf32> to vector<1x8xf32>
    %36 = arith.negf %35 : vector<1x8xf32>
    %37 = math.exp %36 : vector<1x8xf32>
    %cst_16 = arith.constant 1.000000e+00 : f32
    %38 = vector.broadcast %cst_16 : f32 to vector<1x8xf32>
    %39 = arith.addf %38, %37 : vector<1x8xf32>
    %40 = arith.divf %38, %39 : vector<1x8xf32>
    %c0_17 = arith.constant 0 : index
    %c2 = arith.constant 2 : index
    %41 = vector.load %arg5[%c0_17, %c2] : memref<128x8xf32, #tpu.memory_space<vmem>>, vector<128x1xf32>
    %42 = vector.broadcast %41 : vector<128x1xf32> to vector<128x8xf32>
    %43 = vector.broadcast %40 : vector<1x8xf32> to vector<128x8xf32>
    %44 = arith.mulf %42, %43 : vector<128x8xf32>
    %45 = arith.addf %34, %44 : vector<128x8xf32>
    %46 = vector.extract_strided_slice %45 {offsets = [3, 0], sizes = [1, 8], strides = [1, 1]} : vector<128x8xf32> to vector<1x8xf32>
    %47 = arith.negf %46 : vector<1x8xf32>
    %48 = math.exp %47 : vector<1x8xf32>
    %cst_18 = arith.constant 1.000000e+00 : f32
    %49 = vector.broadcast %cst_18 : f32 to vector<1x8xf32>
    %50 = arith.addf %49, %48 : vector<1x8xf32>
    %51 = arith.divf %49, %50 : vector<1x8xf32>
    %c0_19 = arith.constant 0 : index
    %c3 = arith.constant 3 : index
    %52 = vector.load %arg5[%c0_19, %c3] : memref<128x8xf32, #tpu.memory_space<vmem>>, vector<128x1xf32>
    %53 = vector.broadcast %52 : vector<128x1xf32> to vector<128x8xf32>
    %54 = vector.broadcast %51 : vector<1x8xf32> to vector<128x8xf32>
    %55 = arith.mulf %53, %54 : vector<128x8xf32>
    %56 = arith.addf %45, %55 : vector<128x8xf32>
    %57 = vector.extract_strided_slice %56 {offsets = [4, 0], sizes = [1, 8], strides = [1, 1]} : vector<128x8xf32> to vector<1x8xf32>
    %58 = arith.negf %57 : vector<1x8xf32>
    %59 = math.exp %58 : vector<1x8xf32>
    %cst_20 = arith.constant 1.000000e+00 : f32
    %60 = vector.broadcast %cst_20 : f32 to vector<1x8xf32>
    %61 = arith.addf %60, %59 : vector<1x8xf32>
    %62 = arith.divf %60, %61 : vector<1x8xf32>
    %c0_21 = arith.constant 0 : index
    %c4 = arith.constant 4 : index
    %63 = vector.load %arg5[%c0_21, %c4] : memref<128x8xf32, #tpu.memory_space<vmem>>, vector<128x1xf32>
    %64 = vector.broadcast %63 : vector<128x1xf32> to vector<128x8xf32>
    %65 = vector.broadcast %62 : vector<1x8xf32> to vector<128x8xf32>
    %66 = arith.mulf %64, %65 : vector<128x8xf32>
    %67 = arith.addf %56, %66 : vector<128x8xf32>
    %68 = vector.extract_strided_slice %67 {offsets = [5, 0], sizes = [1, 8], strides = [1, 1]} : vector<128x8xf32> to vector<1x8xf32>
    %69 = arith.negf %68 : vector<1x8xf32>
    %70 = math.exp %69 : vector<1x8xf32>
    %cst_22 = arith.constant 1.000000e+00 : f32
    %71 = vector.broadcast %cst_22 : f32 to vector<1x8xf32>
    %72 = arith.addf %71, %70 : vector<1x8xf32>
    %73 = arith.divf %71, %72 : vector<1x8xf32>
    %c0_23 = arith.constant 0 : index
    %c5 = arith.constant 5 : index
    %74 = vector.load %arg5[%c0_23, %c5] : memref<128x8xf32, #tpu.memory_space<vmem>>, vector<128x1xf32>
    %75 = vector.broadcast %74 : vector<128x1xf32> to vector<128x8xf32>
    %76 = vector.broadcast %73 : vector<1x8xf32> to vector<128x8xf32>
    %77 = arith.mulf %75, %76 : vector<128x8xf32>
    %78 = arith.addf %67, %77 : vector<128x8xf32>
    %79 = vector.extract_strided_slice %78 {offsets = [6, 0], sizes = [1, 8], strides = [1, 1]} : vector<128x8xf32> to vector<1x8xf32>
    %80 = arith.negf %79 : vector<1x8xf32>
    %81 = math.exp %80 : vector<1x8xf32>
    %cst_24 = arith.constant 1.000000e+00 : f32
    %82 = vector.broadcast %cst_24 : f32 to vector<1x8xf32>
    %83 = arith.addf %82, %81 : vector<1x8xf32>
    %84 = arith.divf %82, %83 : vector<1x8xf32>
    %c0_25 = arith.constant 0 : index
    %c6 = arith.constant 6 : index
    %85 = vector.load %arg5[%c0_25, %c6] : memref<128x8xf32, #tpu.memory_space<vmem>>, vector<128x1xf32>
    %86 = vector.broadcast %85 : vector<128x1xf32> to vector<128x8xf32>
    %87 = vector.broadcast %84 : vector<1x8xf32> to vector<128x8xf32>
    %88 = arith.mulf %86, %87 : vector<128x8xf32>
    %89 = arith.addf %78, %88 : vector<128x8xf32>
    %c0_26 = arith.constant 0 : index
    %c0_27 = arith.constant 0 : index
    %90 = vector.load %arg7[%c0_26, %c0_27] : memref<128x8xf32, #tpu.memory_space<vmem>>, vector<128x8xf32>
    tpu.vector_store %arg7[%c0_26, %c0_27], %89 {strides = array<i32>} : memref<128x8xf32, #tpu.memory_space<vmem>>, vector<128x8xf32>,
    return
  }
  func.func @transform_0(%arg0: i32) -> (i32, i32) {
    %c0_i32 = arith.constant 0 : i32
    %c0_i32_0 = arith.constant 0 : i32
    return %arg0, %c0_i32 : i32, i32
  }
  func.func @transform_1(%arg0: i32) -> (i32, i32) {
    %c0_i32 = arith.constant 0 : i32
    %c0_i32_0 = arith.constant 0 : i32
    %c0_i32_1 = arith.constant 0 : i32
    return %c0_i32, %c0_i32_0 : i32, i32
  }
  func.func @transform_2(%arg0: i32) -> (i32, i32) {
    %c0_i32 = arith.constant 0 : i32
    %c0_i32_0 = arith.constant 0 : i32
    %c0_i32_1 = arith.constant 0 : i32
    return %c0_i32, %c0_i32_0 : i32, i32
  }
  func.func @transform_3(%arg0: i32) -> (i32, i32) {
    %c0_i32 = arith.constant 0 : i32
    %c0_i32_0 = arith.constant 0 : i32
    %c0_i32_1 = arith.constant 0 : i32
    return %c0_i32, %c0_i32_0 : i32, i32
  }
  func.func @transform_4(%arg0: i32) -> (i32, i32) {
    %c0_i32 = arith.constant 0 : i32
    %c0_i32_0 = arith.constant 0 : i32
    %c0_i32_1 = arith.constant 0 : i32
    return %c0_i32, %c0_i32_0 : i32, i32
  }
  func.func @transform_5(%arg0: i32) -> (i32, i32) {
    %c0_i32 = arith.constant 0 : i32
    %c0_i32_0 = arith.constant 0 : i32
    %c0_i32_1 = arith.constant 0 : i32
    return %c0_i32, %c0_i32_0 : i32, i32
  }
  func.func @transform_6(%arg0: i32) -> (i32, i32) {
    %c0_i32 = arith.constant 0 : i32
    %c0_i32_0 = arith.constant 0 : i32
    return %c0_i32, %arg0 : i32, i32
  }
}

module attributes {stable_mosaic.version = 11 : i64} {
  func.func @cc_head_kernel(%arg0: i32, %arg1: memref<8x16xf32, #tpu.memory_space<vmem>>, %arg2: memref<16x32xf32, #tpu.memory_space<vmem>>, %arg3: memref<1x32xf32, #tpu.memory_space<vmem>>, %arg4: memref<128x32xf32, #tpu.memory_space<vmem>>, %arg5: memref<128x8xf32, #tpu.memory_space<vmem>>, %arg6: memref<128x1xf32, #tpu.memory_space<vmem>>, %arg7: memref<128x8xf32, #tpu.memory_space<vmem>>) attributes {dimension_semantics = [#tpu.dimension_semantics<parallel>], iteration_bounds = array<i64: 1>, scalar_prefetch = 0 : i64, scratch_operands = 0 : i64, tpu.core_type = #tpu.core_type<tc>, window_params = [{transform_indices = @transform_0, window_bounds = array<i64: 8, 16>}, {pipeline_mode = #tpu.pipeline_mode<synchronous>, transform_indices = @transform_1, window_bounds = array<i64: 16, 32>}, {pipeline_mode = #tpu.pipeline_mode<synchronous>, transform_indices = @transform_2, window_bounds = array<i64: 1, 32>}, {pipeline_mode = #tpu.pipeline_mode<synchronous>, transform_indices = @transform_3, window_bounds = array<i64: 128, 32>}, {pipeline_mode = #tpu.pipeline_mode<synchronous>, transform_indices = @transform_4, window_bounds = array<i64: 128, 8>}, {pipeline_mode = #tpu.pipeline_mode<synchronous>, transform_indices = @transform_5, window_bounds = array<i64: 128, 1>}, {transform_indices = @transform_6, window_bounds = array<i64: 128, 8>}]} {
    %c0 = arith.constant 0 : index
    %c0_0 = arith.constant 0 : index
    %0 = vector.load %arg1[%c0, %c0_0] : memref<8x16xf32, #tpu.memory_space<vmem>>, vector<8x16xf32>
    %c0_1 = arith.constant 0 : index
    %c0_2 = arith.constant 0 : index
    %1 = vector.load %arg2[%c0_1, %c0_2] : memref<16x32xf32, #tpu.memory_space<vmem>>, vector<16x32xf32>
    %cst = arith.constant dense<0.000000e+00> : vector<8x32xf32>
    %2 = tpu.matmul %0, %1, %cst {dimension_numbers = #tpu.dot_dimension_numbers<[1], [0], [0], [1], [0, 0, 1, 1], [], []>} : vector<8x16xf32>, vector<16x32xf32>, vector<8x32xf32> -> vector<8x32xf32>
    %c0_3 = arith.constant 0 : index
    %c0_4 = arith.constant 0 : index
    %3 = vector.load %arg3[%c0_3, %c0_4] : memref<1x32xf32, #tpu.memory_space<vmem>>, vector<1x32xf32>
    %4 = vector.broadcast %3 : vector<1x32xf32> to vector<8x32xf32>
    %5 = arith.addf %2, %4 : vector<8x32xf32>
    %cst_5 = arith.constant 0.000000e+00 : f32
    %6 = vector.broadcast %cst_5 : f32 to vector<8x32xf32>
    %7 = arith.maximumf %5, %6 : vector<8x32xf32>
    %c0_6 = arith.constant 0 : index
    %c0_7 = arith.constant 0 : index
    %8 = vector.load %arg4[%c0_6, %c0_7] : memref<128x32xf32, #tpu.memory_space<vmem>>, vector<128x32xf32>
    %cst_8 = arith.constant dense<0.000000e+00> : vector<128x8xf32>
    %9 = tpu.matmul %8, %7, %cst_8 {dimension_numbers = #tpu.dot_dimension_numbers<[1], [1], [0], [0], [0, 0, 1, 0], [], []>} : vector<128x32xf32>, vector<8x32xf32>, vector<128x8xf32> -> vector<128x8xf32>
    %c0_9 = arith.constant 0 : index
    %c0_10 = arith.constant 0 : index
    %10 = vector.load %arg6[%c0_9, %c0_10] : memref<128x1xf32, #tpu.memory_space<vmem>>, vector<128x1xf32>
    %11 = vector.broadcast %10 : vector<128x1xf32> to vector<128x8xf32>
    %12 = arith.addf %9, %11 : vector<128x8xf32>
    %13 = vector.extract_strided_slice %12 {offsets = [0, 0], sizes = [1, 8], strides = [1, 1]} : vector<128x8xf32> to vector<1x8xf32>
    %14 = arith.negf %13 : vector<1x8xf32>
    %15 = math.exp %14 : vector<1x8xf32>
    %cst_11 = arith.constant 1.000000e+00 : f32
    %16 = vector.broadcast %cst_11 : f32 to vector<1x8xf32>
    %17 = arith.addf %16, %15 : vector<1x8xf32>
    %18 = arith.divf %16, %17 : vector<1x8xf32>
    %c0_12 = arith.constant 0 : index
    %c0_13 = arith.constant 0 : index
    %19 = vector.load %arg5[%c0_12, %c0_13] : memref<128x8xf32, #tpu.memory_space<vmem>>, vector<128x1xf32>
    %20 = vector.broadcast %19 : vector<128x1xf32> to vector<128x8xf32>
    %21 = vector.broadcast %18 : vector<1x8xf32> to vector<128x8xf32>
    %22 = arith.mulf %20, %21 : vector<128x8xf32>
    %23 = arith.addf %12, %22 : vector<128x8xf32>
    %24 = vector.extract_strided_slice %23 {offsets = [1, 0], sizes = [1, 8], strides = [1, 1]} : vector<128x8xf32> to vector<1x8xf32>
    %25 = arith.negf %24 : vector<1x8xf32>
    %26 = math.exp %25 : vector<1x8xf32>
    %cst_14 = arith.constant 1.000000e+00 : f32
    %27 = vector.broadcast %cst_14 : f32 to vector<1x8xf32>
    %28 = arith.addf %27, %26 : vector<1x8xf32>
    %29 = arith.divf %27, %28 : vector<1x8xf32>
    %c0_15 = arith.constant 0 : index
    %c1 = arith.constant 1 : index
    %30 = vector.load %arg5[%c0_15, %c1] : memref<128x8xf32, #tpu.memory_space<vmem>>, vector<128x1xf32>
    %31 = vector.broadcast %30 : vector<128x1xf32> to vector<128x8xf32>
    %32 = vector.broadcast %29 : vector<1x8xf32> to vector<128x8xf32>
    %33 = arith.mulf %31, %32 : vector<128x8xf32>
    %34 = arith.addf %23, %33 : vector<128x8xf32>
    %35 = vector.extract_strided_slice %34 {offsets = [2, 0], sizes = [1, 8], strides = [1, 1]} : vector<128x8xf32> to vector<1x8xf32>
    %36 = arith.negf %35 : vector<1x8xf32>
    %37 = math.exp %36 : vector<1x8xf32>
    %cst_16 = arith.constant 1.000000e+00 : f32
    %38 = vector.broadcast %cst_16 : f32 to vector<1x8xf32>
    %39 = arith.addf %38, %37 : vector<1x8xf32>
    %40 = arith.divf %38, %39 : vector<1x8xf32>
    %c0_17 = arith.constant 0 : index
    %c2 = arith.constant 2 : index
    %41 = vector.load %arg5[%c0_17, %c2] : memref<128x8xf32, #tpu.memory_space<vmem>>, vector<128x1xf32>
    %42 = vector.broadcast %41 : vector<128x1xf32> to vector<128x8xf32>
    %43 = vector.broadcast %40 : vector<1x8xf32> to vector<128x8xf32>
    %44 = arith.mulf %42, %43 : vector<128x8xf32>
    %45 = arith.addf %34, %44 : vector<128x8xf32>
    %46 = vector.extract_strided_slice %45 {offsets = [3, 0], sizes = [1, 8], strides = [1, 1]} : vector<128x8xf32> to vector<1x8xf32>
    %47 = arith.negf %46 : vector<1x8xf32>
    %48 = math.exp %47 : vector<1x8xf32>
    %cst_18 = arith.constant 1.000000e+00 : f32
    %49 = vector.broadcast %cst_18 : f32 to vector<1x8xf32>
    %50 = arith.addf %49, %48 : vector<1x8xf32>
    %51 = arith.divf %49, %50 : vector<1x8xf32>
    %c0_19 = arith.constant 0 : index
    %c3 = arith.constant 3 : index
    %52 = vector.load %arg5[%c0_19, %c3] : memref<128x8xf32, #tpu.memory_space<vmem>>, vector<128x1xf32>
    %53 = vector.broadcast %52 : vector<128x1xf32> to vector<128x8xf32>
    %54 = vector.broadcast %51 : vector<1x8xf32> to vector<128x8xf32>
    %55 = arith.mulf %53, %54 : vector<128x8xf32>
    %56 = arith.addf %45, %55 : vector<128x8xf32>
    %57 = vector.extract_strided_slice %56 {offsets = [4, 0], sizes = [1, 8], strides = [1, 1]} : vector<128x8xf32> to vector<1x8xf32>
    %58 = arith.negf %57 : vector<1x8xf32>
    %59 = math.exp %58 : vector<1x8xf32>
    %cst_20 = arith.constant 1.000000e+00 : f32
    %60 = vector.broadcast %cst_20 : f32 to vector<1x8xf32>
    %61 = arith.addf %60, %59 : vector<1x8xf32>
    %62 = arith.divf %60, %61 : vector<1x8xf32>
    %c0_21 = arith.constant 0 : index
    %c4 = arith.constant 4 : index
    %63 = vector.load %arg5[%c0_21, %c4] : memref<128x8xf32, #tpu.memory_space<vmem>>, vector<128x1xf32>
    %64 = vector.broadcast %63 : vector<128x1xf32> to vector<128x8xf32>
    %65 = vector.broadcast %62 : vector<1x8xf32> to vector<128x8xf32>
    %66 = arith.mulf %64, %65 : vector<128x8xf32>
    %67 = arith.addf %56, %66 : vector<128x8xf32>
    %68 = vector.extract_strided_slice %67 {offsets = [5, 0], sizes = [1, 8], strides = [1, 1]} : vector<128x8xf32> to vector<1x8xf32>
    %69 = arith.negf %68 : vector<1x8xf32>
    %70 = math.exp %69 : vector<1x8xf32>
    %cst_22 = arith.constant 1.000000e+00 : f32
    %71 = vector.broadcast %cst_22 : f32 to vector<1x8xf32>
    %72 = arith.addf %71, %70 : vector<1x8xf32>
    %73 = arith.divf %71, %72 : vector<1x8xf32>
    %c0_23 = arith.constant 0 : index
    %c5 = arith.constant 5 : index
    %74 = vector.load %arg5[%c0_23, %c5] : memref<128x8xf32, #tpu.memory_space<vmem>>, vector<128x1xf32>
    %75 = vector.broadcast %74 : vector<128x1xf32> to vector<128x8xf32>
    %76 = vector.broadcast %73 : vector<1x8xf32> to vector<128x8xf32>
    %77 = arith.mulf %75, %76 : vector<128x8xf32>
    %78 = arith.addf %67, %77 : vector<128x8xf32>
    %79 = vector.extract_strided_slice %78 {offsets = [6, 0], sizes = [1, 8], strides = [1, 1]} : vector<128x8xf32> to vector<1x8xf32>
    %80 = arith.negf %79 : vector<1x8xf32>
    %81 = math.exp %80 : vector<1x8xf32>
    %cst_24 = arith.constant 1.000000e+00 : f32
    %82 = vector.broadcast %cst_24 : f32 to vector<1x8xf32>
    %83 = arith.addf %82, %81 : vector<1x8xf32>
    %84 = arith.divf %82, %83 : vector<1x8xf32>
    %c0_25 = arith.constant 0 : index
    %c6 = arith.constant 6 : index
    %85 = vector.load %arg5[%c0_25, %c6] : memref<128x8xf32, #tpu.memory_space<vmem>>, vector<128x1xf32>
    %86 = vector.broadcast %85 : vector<128x1xf32> to vector<128x8xf32>
    %87 = vector.broadcast %84 : vector<1x8xf32> to vector<128x8xf32>
    %88 = arith.mulf %86, %87 : vector<128x8xf32>
    %89 = arith.addf %78, %88 : vector<128x8xf32>
    %c0_26 = arith.constant 0 : index
    %c0_27 = arith.constant 0 : index
    %90 = vector.load %arg7[%c0_26, %c0_27] : memref<128x8xf32, #tpu.memory_space<vmem>>, vector<128x8xf32>
    tpu.vector_store %arg7[%c0_26, %c0_27], %89 {strides = array<i32>} : memref<128x8xf32, #tpu.memory_space<vmem>>, vector<128x8xf32>,
    return
  }
  func.func @transform_0(%arg0: i32) -> (i32, i32) {
    %c0_i32 = arith.constant 0 : i32
    %c0_i32_0 = arith.constant 0 : i32
    return %arg0, %c0_i32 : i32, i32
  }
  func.func @transform_1(%arg0: i32) -> (i32, i32) {
    %c0_i32 = arith.constant 0 : i32
    %c0_i32_0 = arith.constant 0 : i32
    %c0_i32_1 = arith.constant 0 : i32
    return %c0_i32, %c0_i32_0 : i32, i32
  }
  func.func @transform_2(%arg0: i32) -> (i32, i32) {
    %c0_i32 = arith.constant 0 : i32
    %c0_i32_0 = arith.constant 0 : i32
    %c0_i32_1 = arith.constant 0 : i32
    return %c0_i32, %c0_i32_0 : i32, i32
  }
  func.func @transform_3(%arg0: i32) -> (i32, i32) {
    %c0_i32 = arith.constant 0 : i32
    %c0_i32_0 = arith.constant 0 : i32
    %c0_i32_1 = arith.constant 0 : i32
    return %c0_i32, %c0_i32_0 : i32, i32
  }
  func.func @transform_4(%arg0: i32) -> (i32, i32) {
    %c0_i32 = arith.constant 0 : i32
    %c0_i32_0 = arith.constant 0 : i32
    %c0_i32_1 = arith.constant 0 : i32
    return %c0_i32, %c0_i32_0 : i32, i32
  }
  func.func @transform_5(%arg0: i32) -> (i32, i32) {
    %c0_i32 = arith.constant 0 : i32
    %c0_i32_0 = arith.constant 0 : i32
    %c0_i32_1 = arith.constant 0 : i32
    return %c0_i32, %c0_i32_0 : i32, i32
  }
  func.func @transform_6(%arg0: i32) -> (i32, i32) {
    %c0_i32 = arith.constant 0 : i32
    %c0_i32_0 = arith.constant 0 : i32
    return %c0_i32, %arg0 : i32, i32
  }
}

</mosaic_0001>

<llo_original>
// kernel: tpu_custom_call.1
$region0: #{tpu_custom_call.1}
  #allocation0 [shape = 'u32[]', space=smem, size = 0x4, offset = 0x4, fixed_abs, tag = 'smem constant byte address 0x4 - core index']
  #allocation1 [shape = 'u32[144,128]{1,0:T(1,128)}', space=vmem, size = 0x12000, scoped, tag = 'internal scratch']
  %s0 = inlined_call_operand.vmem [shape: f32[8,16], index: 0, kind: input, shape index: {}]
  %s1 = inlined_call_operand.vmem [shape: f32[16,32], index: 1, kind: input, shape index: {}]
  %s2 = inlined_call_operand.vmem [shape: f32[1,32], index: 2, kind: input, shape index: {}]
  %s3 = inlined_call_operand.vmem [shape: f32[128,32], index: 3, kind: input, shape index: {}]
  %s4 = inlined_call_operand.vmem [shape: f32[128,8], index: 4, kind: input, shape index: {}]
  %s5 = inlined_call_operand.vmem [shape: f32[128,1], index: 5, kind: input, shape index: {}]
  %s6 = inlined_call_operand.vmem [shape: f32[128,8], index: 6, kind: output, shape index: {}]
  %s7 = sld [smem:[#allocation0]]
  $region34: #{tpu_custom_call.1} parent=0
    _
  %s9 = ssub.s32 1, %s7
  %s10 = scalar_select 0, %s9, %s7
  // Predicated region
  $region2: #{tpu_custom_call.1} parent=0 // pred_check
    _
  $region3: #{tpu_custom_call.1} parent=0 // pred_check_branch
    %12 = sbr.rel (0) target = $region5
  $region4: #{tpu_custom_call.1} parent=0 // pred_region
    _
  $region5: #{tpu_custom_call.1} parent=0 // pred_fallthru
    _
  // Predicated region
  $region6: #{tpu_custom_call.1} parent=0 // pred_check
    _
  $region7: #{tpu_custom_call.1} parent=0 // pred_check_branch
    %14 = sbr.rel (0) target = $region9
  $region8: #{tpu_custom_call.1} parent=0 // pred_region
    _
  $region9: #{tpu_custom_call.1} parent=0 // pred_fallthru
    _
  // Predicated region
  $region10: #{tpu_custom_call.1} parent=0 // pred_check
    _
  $region11: #{tpu_custom_call.1} parent=0 // pred_check_branch
    %16 = sbr.rel (0) target = $region13
  $region12: #{tpu_custom_call.1} parent=0 // pred_region
    _
  $region13: #{tpu_custom_call.1} parent=0 // pred_fallthru
    _
  // Predicated region
  $region14: #{tpu_custom_call.1} parent=0 // pred_check
    _
  $region15: #{tpu_custom_call.1} parent=0 // pred_check_branch
    %18 = sbr.rel (0) target = $region17
  $region16: #{tpu_custom_call.1} parent=0 // pred_region
    _
  $region17: #{tpu_custom_call.1} parent=0 // pred_fallthru
    _
  // Predicated region
  $region18: #{tpu_custom_call.1} parent=0 // pred_check
    _
  $region19: #{tpu_custom_call.1} parent=0 // pred_check_branch
    %20 = sbr.rel (0) target = $region21
  $region20: #{tpu_custom_call.1} parent=0 // pred_region
    _
  $region21: #{tpu_custom_call.1} parent=0 // pred_fallthru
    _
  // Predicated region
  $region22: #{tpu_custom_call.1} parent=0 // pred_check
    _
  $region23: #{tpu_custom_call.1} parent=0 // pred_check_branch
    %22 = sbr.rel (0) target = $region25
  $region24: #{tpu_custom_call.1} parent=0 // pred_region
    _
  $region25: #{tpu_custom_call.1} parent=0 // pred_fallthru
    _
  %v23 = vld [vmem:[%s0] sm:$0xff]
  %v24 = vld [vmem:[%s1] sm:$0xff]
  %v25 = vld [vmem:[%s1 + $0x8] sm:$0xff]
  %v26 = vld [vmem:[%s2] sm:$0x1]
  %v28 = vlaneseq
  %v29 = vshrl.u32 %v28, 7
  %v30 = vsub.s32 0, %v29
  %v31 = vrot.slane %v26, %v30
  %vm33 = vcmask 130048
  %v35 = vsel %vm33, %v23, 0
  %37 = vmatprep.subr.mxu0 0.0
  %38 = vmatpush1.msra.mxu0 %v24
  %39 = vmatprep.subr.mxu0 0.0
  %40 = vmatpush1.msra.mxu0 %v25
  %41 = vmatprep.subr.mxu0 0.0
  %42 = vmatpush1.msra.mxu0 0.0
  %43 = vmatprep.subr.mxu0 0.0
  %44 = vmatpush1.msra.mxu0 0.0
  %45 = vmatprep.subr.mxu0 0.0
  %46 = vmatpush1.msra.mxu0 0.0
  %47 = vmatprep.subr.mxu0 0.0
  %48 = vmatpush1.msra.mxu0 0.0
  %49 = vmatprep.subr.mxu0 0.0
  %50 = vmatpush1.msra.mxu0 0.0
  %51 = vmatprep.subr.mxu0 0.0
  %52 = vmatpush1.msra.mxu0 0.0
  %53 = vmatprep.subr.mxu0 0.0
  %54 = vmatpush1.msra.mxu0 0.0
  %55 = vmatprep.subr.mxu0 0.0
  %56 = vmatpush1.msra.mxu0 0.0
  %57 = vmatprep.subr.mxu0 0.0
  %58 = vmatpush1.msra.mxu0 0.0
  %59 = vmatprep.subr.mxu0 0.0
  %60 = vmatpush1.msra.mxu0 0.0
  %61 = vmatprep.subr.mxu0 0.0
  %62 = vmatpush1.msra.mxu0 0.0
  %63 = vmatprep.subr.mxu0 0.0
  %64 = vmatpush1.msra.mxu0 0.0
  %65 = vmatprep.subr.mxu0 0.0
  %66 = vmatpush1.msra.mxu0 0.0
  %67 = vmatprep.subr.mxu0 0.0
  %68 = vmatpush1.msra.mxu0 0.0
  %69 = vmatprep.subr.mxu0 0.0
  %70 = vmatpush1.msra.mxu0 0.0
  %71 = vmatprep.subr.mxu0 0.0
  %72 = vmatpush1.msra.mxu0 0.0
  %73 = vmatprep.subr.mxu0 0.0
  %74 = vmatpush1.msra.mxu0 0.0
  %75 = vmatprep.subr.mxu0 0.0
  %76 = vmatpush1.msra.mxu0 0.0
  %77 = vmatprep.subr.mxu0 0.0
  %78 = vmatpush1.msra.mxu0 0.0
  %79 = vmatprep.subr.mxu0 0.0
  %80 = vmatpush1.msra.mxu0 0.0
  %81 = vmatprep.subr.mxu0 0.0
  %82 = vmatpush1.msra.mxu0 0.0
  %83 = vmatprep.subr.mxu0 0.0
  %84 = vmatpush1.msra.mxu0 0.0
  %85 = vmatprep.subr.mxu0 0.0
  %86 = vmatpush1.msra.mxu0 0.0
  %87 = vmatprep.subr.mxu0 0.0
  %88 = vmatpush1.msra.mxu0 0.0
  %89 = vmatprep.subr.mxu0 0.0
  %90 = vmatpush1.msra.mxu0 0.0
  %91 = vmatprep.subr.mxu0 0.0
  %92 = vmatpush1.msra.mxu0 0.0
  %93 = vmatprep.subr.mxu0 0.0
  %94 = vmatpush1.msra.mxu0 0.0
  %95 = vmatprep.subr.mxu0 0.0
  %96 = vmatpush1.msra.mxu0 0.0
  %97 = vmatprep.subr.mxu0 0.0
  %98 = vmatpush1.msra.mxu0 0.0
  %99 = vmatprep.subr.mxu0 0.0
  %100 = vmatpush1.msra.mxu0 0.0
  %101 = vmatprep.mubr.f32.mxu0 0.0
  %102 = vmatmul.mubr.f32.gmra.mrb[0].mxu0 %v35
  %v103 = vpop.f32.mrb[0].mxu0
  %v104 = vadd.f32 %v31, %v103
  %v105 = vpop.f32.mrb[0].mxu0
  %106 = vdwg.mxu0
  %v107 = vmax.f32 %v104, 0.0
  %v108 = vld [vmem:[%s3] sm:$0xff]
  %v109 = vld [vmem:[%s3 + $0x8] sm:$0xff]
  %v110 = vld [vmem:[%s3 + $0x10] sm:$0xff]
  %v111 = vld [vmem:[%s3 + $0x18] sm:$0xff]
  %v112 = vld [vmem:[%s3 + $0x20] sm:$0xff]
  %v113 = vld [vmem:[%s3 + $0x28] sm:$0xff]
  %v114 = vld [vmem:[%s3 + $0x30] sm:$0xff]
  %v115 = vld [vmem:[%s3 + $0x38] sm:$0xff]
  %v116 = vld [vmem:[%s3 + $0x40] sm:$0xff]
  %v117 = vld [vmem:[%s3 + $0x48] sm:$0xff]
  %v118 = vld [vmem:[%s3 + $0x50] sm:$0xff]
  %v119 = vld [vmem:[%s3 + $0x58] sm:$0xff]
  %v120 = vld [vmem:[%s3 + $0x60] sm:$0xff]
  %v121 = vld [vmem:[%s3 + $0x68] sm:$0xff]
  %v122 = vld [vmem:[%s3 + $0x70] sm:$0xff]
  %v123 = vld [vmem:[%s3 + $0x78] sm:$0xff]
  %v124 = vld [vmem:[%s5] sm:$0xff]
  %v125 = vld [vmem:[%s5 + $0x8] sm:$0xff]
  %v126 = vld [vmem:[%s5 + $0x10] sm:$0xff]
  %v127 = vld [vmem:[%s5 + $0x18] sm:$0xff]
  %v128 = vld [vmem:[%s5 + $0x20] sm:$0xff]
  %v129 = vld [vmem:[%s5 + $0x28] sm:$0xff]
  %v130 = vld [vmem:[%s5 + $0x30] sm:$0xff]
  %v131 = vld [vmem:[%s5 + $0x38] sm:$0xff]
  %v132 = vld [vmem:[%s5 + $0x40] sm:$0xff]
  %v133 = vld [vmem:[%s5 + $0x48] sm:$0xff]
  %v134 = vld [vmem:[%s5 + $0x50] sm:$0xff]
  %v135 = vld [vmem:[%s5 + $0x58] sm:$0xff]
  %v136 = vld [vmem:[%s5 + $0x60] sm:$0xff]
  %v137 = vld [vmem:[%s5 + $0x68] sm:$0xff]
  %v138 = vld [vmem:[%s5 + $0x70] sm:$0xff]
  %v139 = vld [vmem:[%s5 + $0x78] sm:$0xff]
  %141 = vset.pattern.permute.xlu0 0
  %142 = vperm.xlu0 %141, %v124
  %v143 = vpop.permute.xlu0 %142
  %146 = vset.pattern.permute.xlu0 0
  %147 = vperm.xlu0 %146, %v125
  %v148 = vpop.permute.xlu0 %147
  %151 = vset.pattern.permute.xlu0 0
  %152 = vperm.xlu0 %151, %v126
  %v153 = vpop.permute.xlu0 %152
  %156 = vset.pattern.permute.xlu0 0
  %157 = vperm.xlu0 %156, %v127
  %v158 = vpop.permute.xlu0 %157
  %161 = vset.pattern.permute.xlu0 0
  %162 = vperm.xlu0 %161, %v128
  %v163 = vpop.permute.xlu0 %162
  %166 = vset.pattern.permute.xlu0 0
  %167 = vperm.xlu0 %166, %v129
  %v168 = vpop.permute.xlu0 %167
  %171 = vset.pattern.permute.xlu0 0
  %172 = vperm.xlu0 %171, %v130
  %v173 = vpop.permute.xlu0 %172
  %176 = vset.pattern.permute.xlu0 0
  %177 = vperm.xlu0 %176, %v131
  %v178 = vpop.permute.xlu0 %177
  %181 = vset.pattern.permute.xlu0 0
  %182 = vperm.xlu0 %181, %v132
  %v183 = vpop.permute.xlu0 %182
  %186 = vset.pattern.permute.xlu0 0
  %187 = vperm.xlu0 %186, %v133
  %v188 = vpop.permute.xlu0 %187
  %191 = vset.pattern.permute.xlu0 0
  %192 = vperm.xlu0 %191, %v134
  %v193 = vpop.permute.xlu0 %192
  %196 = vset.pattern.permute.xlu0 0
  %197 = vperm.xlu0 %196, %v135
  %v198 = vpop.permute.xlu0 %197
  %201 = vset.pattern.permute.xlu0 0
  %202 = vperm.xlu0 %201, %v136
  %v203 = vpop.permute.xlu0 %202
  %206 = vset.pattern.permute.xlu0 0
  %207 = vperm.xlu0 %206, %v137
  %v208 = vpop.permute.xlu0 %207
  %211 = vset.pattern.permute.xlu0 0
  %212 = vperm.xlu0 %211, %v138
  %v213 = vpop.permute.xlu0 %212
  %216 = vset.pattern.permute.xlu0 0
  %217 = vperm.xlu0 %216, %v139
  %v218 = vpop.permute.xlu0 %217
  %vm220 = vcmask 261120
  %v222 = vsel %vm220, %v108, 0
  %v225 = vsel %vm220, %v109, 0
  %v228 = vsel %vm220, %v110, 0
  %v231 = vsel %vm220, %v111, 0
  %v234 = vsel %vm220, %v112, 0
  %v237 = vsel %vm220, %v113, 0
  %v240 = vsel %vm220, %v114, 0
  %v243 = vsel %vm220, %v115, 0
  %v246 = vsel %vm220, %v116, 0
  %v249 = vsel %vm220, %v117, 0
  %v252 = vsel %vm220, %v118, 0
  %v255 = vsel %vm220, %v119, 0
  %v258 = vsel %vm220, %v120, 0
  %v261 = vsel %vm220, %v121, 0
  %v264 = vsel %vm220, %v122, 0
  %v267 = vsel %vm220, %v123, 0
  %v270 = vsel %vm220, %v107, 0
  %272 = vmatprep.subr.mxu0 0.0
  %273 = vmatpush1.xpose.msra.mxu0 %v270
  %274 = vmatprep.subr.mxu0 0.0
  %275 = vmatpush1.xpose.msra.mxu0 0.0
  %276 = vmatprep.subr.mxu0 0.0
  %277 = vmatpush1.xpose.msra.mxu0 0.0
  %278 = vmatprep.subr.mxu0 0.0
  %279 = vmatpush1.xpose.msra.mxu0 0.0
  %280 = vmatprep.subr.mxu0 0.0
  %281 = vmatpush1.xpose.msra.mxu0 0.0
  %282 = vmatprep.subr.mxu0 0.0
  %283 = vmatpush1.xpose.msra.mxu0 0.0
  %284 = vmatprep.subr.mxu0 0.0
  %285 = vmatpush1.xpose.msra.mxu0 0.0
  %286 = vmatprep.subr.mxu0 0.0
  %287 = vmatpush1.xpose.msra.mxu0 0.0
  %288 = vmatprep.subr.mxu0 0.0
  %289 = vmatpush1.xpose.msra.mxu0 0.0
  %290 = vmatprep.subr.mxu0 0.0
  %291 = vmatpush1.xpose.msra.mxu0 0.0
  %292 = vmatprep.subr.mxu0 0.0
  %293 = vmatpush1.xpose.msra.mxu0 0.0
  %294 = vmatprep.subr.mxu0 0.0
  %295 = vmatpush1.xpose.msra.mxu0 0.0
  %296 = vmatprep.subr.mxu0 0.0
  %297 = vmatpush1.xpose.msra.mxu0 0.0
  %298 = vmatprep.subr.mxu0 0.0
  %299 = vmatpush1.xpose.msra.mxu0 0.0
  %300 = vmatprep.subr.mxu0 0.0
  %301 = vmatpush1.xpose.msra.mxu0 0.0
  %302 = vmatprep.subr.mxu0 0.0
  %303 = vmatpush1.xpose.msra.mxu0 0.0
  %304 = vmatprep.subr.mxu0 0.0
  %305 = vmatpush1.xpose.msra.mxu0 0.0
  %306 = vmatprep.subr.mxu0 0.0
  %307 = vmatpush1.xpose.msra.mxu0 0.0
  %308 = vmatprep.subr.mxu0 0.0
  %309 = vmatpush1.xpose.msra.mxu0 0.0
  %310 = vmatprep.subr.mxu0 0.0
  %311 = vmatpush1.xpose.msra.mxu0 0.0
  %312 = vmatprep.subr.mxu0 0.0
  %313 = vmatpush1.xpose.msra.mxu0 0.0
  %314 = vmatprep.subr.mxu0 0.0
  %315 = vmatpush1.xpose.msra.mxu0 0.0
  %316 = vmatprep.subr.mxu0 0.0
  %317 = vmatpush1.xpose.msra.mxu0 0.0
  %318 = vmatprep.subr.mxu0 0.0
  %319 = vmatpush1.xpose.msra.mxu0 0.0
  %320 = vmatprep.subr.mxu0 0.0
  %321 = vmatpush1.xpose.msra.mxu0 0.0
  %322 = vmatprep.subr.mxu0 0.0
  %323 = vmatpush1.xpose.msra.mxu0 0.0
  %324 = vmatprep.subr.mxu0 0.0
  %325 = vmatpush1.xpose.msra.mxu0 0.0
  %326 = vmatprep.subr.mxu0 0.0
  %327 = vmatpush1.xpose.msra.mxu0 0.0
  %328 = vmatprep.subr.mxu0 0.0
  %329 = vmatpush1.xpose.msra.mxu0 0.0
  %330 = vmatprep.subr.mxu0 0.0
  %331 = vmatpush1.xpose.msra.mxu0 0.0
  %332 = vmatprep.subr.mxu0 0.0
  %333 = vmatpush1.xpose.msra.mxu0 0.0
  %334 = vmatprep.subr.mxu0 0.0
  %335 = vmatpush1.xpose.msra.mxu0 0.0
  %336 = vmatprep.mubr.f32.mxu0 0.0
  %337 = vmatmul.mubr.f32.gmra.mrb[0].mxu0 %v222
  %v338 = vpop.f32.mrb[0].mxu0
  %v339 = vadd.f32 %v143, %v338
  %v340 = vpop.f32.mrb[0].mxu0
  %341 = vmatprep.mubr.f32.mxu0 0.0
  %342 = vmatmul.mubr.f32.gmra.mrb[0].mxu0 %v225
  %v343 = vpop.f32.mrb[0].mxu0
  %v344 = vadd.f32 %v148, %v343
  %v345 = vpop.f32.mrb[0].mxu0
  %346 = vmatprep.mubr.f32.mxu0 0.0
  %347 = vmatmul.mubr.f32.gmra.mrb[0].mxu0 %v228
  %v348 = vpop.f32.mrb[0].mxu0
  %v349 = vadd.f32 %v153, %v348
  %v350 = vpop.f32.mrb[0].mxu0
  %351 = vmatprep.mubr.f32.mxu0 0.0
  %352 = vmatmul.mubr.f32.gmra.mrb[0].mxu0 %v231
  %v353 = vpop.f32.mrb[0].mxu0
  %v354 = vadd.f32 %v158, %v353
  %v355 = vpop.f32.mrb[0].mxu0
  %356 = vmatprep.mubr.f32.mxu0 0.0
  %357 = vmatmul.mubr.f32.gmra.mrb[0].mxu0 %v234
  %v358 = vpop.f32.mrb[0].mxu0
  %v359 = vadd.f32 %v163, %v358
  %v360 = vpop.f32.mrb[0].mxu0
  %361 = vmatprep.mubr.f32.mxu0 0.0
  %362 = vmatmul.mubr.f32.gmra.mrb[0].mxu0 %v237
  %v363 = vpop.f32.mrb[0].mxu0
  %v364 = vadd.f32 %v168, %v363
  %v365 = vpop.f32.mrb[0].mxu0
  %366 = vmatprep.mubr.f32.mxu0 0.0
  %367 = vmatmul.mubr.f32.gmra.mrb[0].mxu0 %v240
  %v368 = vpop.f32.mrb[0].mxu0
  %v369 = vadd.f32 %v173, %v368
  %v370 = vpop.f32.mrb[0].mxu0
  %371 = vmatprep.mubr.f32.mxu0 0.0
  %372 = vmatmul.mubr.f32.gmra.mrb[0].mxu0 %v243
  %v373 = vpop.f32.mrb[0].mxu0
  %v374 = vadd.f32 %v178, %v373
  %v375 = vpop.f32.mrb[0].mxu0
  %376 = vmatprep.mubr.f32.mxu0 0.0
  %377 = vmatmul.mubr.f32.gmra.mrb[0].mxu0 %v246
  %v378 = vpop.f32.mrb[0].mxu0
  %v379 = vadd.f32 %v183, %v378
  %v380 = vpop.f32.mrb[0].mxu0
  %381 = vmatprep.mubr.f32.mxu0 0.0
  %382 = vmatmul.mubr.f32.gmra.mrb[0].mxu0 %v249
  %v383 = vpop.f32.mrb[0].mxu0
  %v384 = vadd.f32 %v188, %v383
  %v385 = vpop.f32.mrb[0].mxu0
  %386 = vmatprep.mubr.f32.mxu0 0.0
  %387 = vmatmul.mubr.f32.gmra.mrb[0].mxu0 %v252
  %v388 = vpop.f32.mrb[0].mxu0
  %v389 = vadd.f32 %v193, %v388
  %v390 = vpop.f32.mrb[0].mxu0
  %391 = vmatprep.mubr.f32.mxu0 0.0
  %392 = vmatmul.mubr.f32.gmra.mrb[0].mxu0 %v255
  %v393 = vpop.f32.mrb[0].mxu0
  %v394 = vadd.f32 %v198, %v393
  %v395 = vpop.f32.mrb[0].mxu0
  %396 = vmatprep.mubr.f32.mxu0 0.0
  %397 = vmatmul.mubr.f32.gmra.mrb[0].mxu0 %v258
  %v398 = vpop.f32.mrb[0].mxu0
  %v399 = vadd.f32 %v203, %v398
  %v400 = vpop.f32.mrb[0].mxu0
  %401 = vmatprep.mubr.f32.mxu0 0.0
  %402 = vmatmul.mubr.f32.gmra.mrb[0].mxu0 %v261
  %v403 = vpop.f32.mrb[0].mxu0
  %v404 = vadd.f32 %v208, %v403
  %v405 = vpop.f32.mrb[0].mxu0
  %406 = vmatprep.mubr.f32.mxu0 0.0
  %407 = vmatmul.mubr.f32.gmra.mrb[0].mxu0 %v264
  %v408 = vpop.f32.mrb[0].mxu0
  %v409 = vadd.f32 %v213, %v408
  %v410 = vpop.f32.mrb[0].mxu0
  %411 = vmatprep.mubr.f32.mxu0 0.0
  %412 = vmatmul.mubr.f32.gmra.mrb[0].mxu0 %v267
  %v413 = vpop.f32.mrb[0].mxu0
  %v414 = vadd.f32 %v218, %v413
  %v415 = vpop.f32.mrb[0].mxu0
  %416 = vdwg.mxu0
  %v417 = vxor.u32 %v339, 2147483648
  %v418 = vmul.f32 %v417, 1.442695
  %v419 = vpow.pop %v418
  %v420 = vadd.f32 %v419, 1.0
  %v421 = vrcp.pop %v420
  %v422 = vmul.f32 1.0, %v421
  %v423 = vld [vmem:[%s4] sm:$0xff]
  %v424 = vld [vmem:[%s4 + $0x8] sm:$0xff]
  %v425 = vld [vmem:[%s4 + $0x10] sm:$0xff]
  %v426 = vld [vmem:[%s4 + $0x18] sm:$0xff]
  %v427 = vld [vmem:[%s4 + $0x20] sm:$0xff]
  %v428 = vld [vmem:[%s4 + $0x28] sm:$0xff]
  %v429 = vld [vmem:[%s4 + $0x30] sm:$0xff]
  %v430 = vld [vmem:[%s4 + $0x38] sm:$0xff]
  %v431 = vld [vmem:[%s4 + $0x40] sm:$0xff]
  %v432 = vld [vmem:[%s4 + $0x48] sm:$0xff]
  %v433 = vld [vmem:[%s4 + $0x50] sm:$0xff]
  %v434 = vld [vmem:[%s4 + $0x58] sm:$0xff]
  %v435 = vld [vmem:[%s4 + $0x60] sm:$0xff]
  %v436 = vld [vmem:[%s4 + $0x68] sm:$0xff]
  %v437 = vld [vmem:[%s4 + $0x70] sm:$0xff]
  %v438 = vld [vmem:[%s4 + $0x78] sm:$0xff]
  %440 = vset.pattern.permute.xlu0 0
  %441 = vperm.xlu0 %440, %v423
  %v442 = vpop.permute.xlu0 %441
  %445 = vset.pattern.permute.xlu0 0
  %446 = vperm.xlu0 %445, %v424
  %v447 = vpop.permute.xlu0 %446
  %450 = vset.pattern.permute.xlu0 0
  %451 = vperm.xlu0 %450, %v425
  %v452 = vpop.permute.xlu0 %451
  %455 = vset.pattern.permute.xlu0 0
  %456 = vperm.xlu0 %455, %v426
  %v457 = vpop.permute.xlu0 %456
  %460 = vset.pattern.permute.xlu0 0
  %461 = vperm.xlu0 %460, %v427
  %v462 = vpop.permute.xlu0 %461
  %465 = vset.pattern.permute.xlu0 0
  %466 = vperm.xlu0 %465, %v428
  %v467 = vpop.permute.xlu0 %466
  %470 = vset.pattern.permute.xlu0 0
  %471 = vperm.xlu0 %470, %v429
  %v472 = vpop.permute.xlu0 %471
  %475 = vset.pattern.permute.xlu0 0
  %476 = vperm.xlu0 %475, %v430
  %v477 = vpop.permute.xlu0 %476
  %480 = vset.pattern.permute.xlu0 0
  %481 = vperm.xlu0 %480, %v431
  %v482 = vpop.permute.xlu0 %481
  %485 = vset.pattern.permute.xlu0 0
  %486 = vperm.xlu0 %485, %v432
  %v487 = vpop.permute.xlu0 %486
  %490 = vset.pattern.permute.xlu0 0
  %491 = vperm.xlu0 %490, %v433
  %v492 = vpop.permute.xlu0 %491
  %495 = vset.pattern.permute.xlu0 0
  %496 = vperm.xlu0 %495, %v434
  %v497 = vpop.permute.xlu0 %496
  %500 = vset.pattern.permute.xlu0 0
  %501 = vperm.xlu0 %500, %v435
  %v502 = vpop.permute.xlu0 %501
  %505 = vset.pattern.permute.xlu0 0
  %506 = vperm.xlu0 %505, %v436
  %v507 = vpop.permute.xlu0 %506
  %510 = vset.pattern.permute.xlu0 0
  %511 = vperm.xlu0 %510, %v437
  %v512 = vpop.permute.xlu0 %511
  %515 = vset.pattern.permute.xlu0 0
  %516 = vperm.xlu0 %515, %v438
  %v517 = vpop.permute.xlu0 %516
  %v519 = vlaneseq
  %v520 = vshrl.u32 %v519, 7
  %v521 = vsub.s32 0, %v520
  %v522 = vrot.slane %v422, %v521
  %v523 = vmul.f32 %v442, %v522
  %v524 = vmul.f32 %v447, %v522
  %v525 = vmul.f32 %v452, %v522
  %v526 = vmul.f32 %v457, %v522
  %v527 = vmul.f32 %v462, %v522
  %v528 = vmul.f32 %v467, %v522
  %v529 = vmul.f32 %v472, %v522
  %v530 = vmul.f32 %v477, %v522
  %v531 = vmul.f32 %v482, %v522
  %v532 = vmul.f32 %v487, %v522
  %v533 = vmul.f32 %v492, %v522
  %v534 = vmul.f32 %v497, %v522
  %v535 = vmul.f32 %v502, %v522
  %v536 = vmul.f32 %v507, %v522
  %v537 = vmul.f32 %v512, %v522
  %v538 = vmul.f32 %v517, %v522
  %v539 = vadd.f32 %v339, %v523
  %v540 = vadd.f32 %v344, %v524
  %v541 = vadd.f32 %v349, %v525
  %v542 = vadd.f32 %v354, %v526
  %v543 = vadd.f32 %v359, %v527
  %v544 = vadd.f32 %v364, %v528
  %v545 = vadd.f32 %v369, %v529
  %v546 = vadd.f32 %v374, %v530
  %v547 = vadd.f32 %v379, %v531
  %v548 = vadd.f32 %v384, %v532
  %v549 = vadd.f32 %v389, %v533
  %v550 = vadd.f32 %v394, %v534
  %v551 = vadd.f32 %v399, %v535
  %v552 = vadd.f32 %v404, %v536
  %v553 = vadd.f32 %v409, %v537
  %v554 = vadd.f32 %v414, %v538
  %v555 = vxor.u32 %v539, 2147483648
  %v556 = vmul.f32 %v555, 1.442695
  %v557 = vpow.pop %v556
  %v558 = vadd.f32 %v557, 1.0
  %v559 = vrcp.pop %v558
  %v560 = vmul.f32 1.0, %v559
  %561 = vset.pattern.permute.xlu0 1
  %562 = vperm.xlu0 %561, %v423
  %v563 = vpop.permute.xlu0 %562
  %565 = vset.pattern.permute.xlu0 1
  %566 = vperm.xlu0 %565, %v424
  %v567 = vpop.permute.xlu0 %566
  %569 = vset.pattern.permute.xlu0 1
  %570 = vperm.xlu0 %569, %v425
  %v571 = vpop.permute.xlu0 %570
  %573 = vset.pattern.permute.xlu0 1
  %574 = vperm.xlu0 %573, %v426
  %v575 = vpop.permute.xlu0 %574
  %577 = vset.pattern.permute.xlu0 1
  %578 = vperm.xlu0 %577, %v427
  %v579 = vpop.permute.xlu0 %578
  %581 = vset.pattern.permute.xlu0 1
  %582 = vperm.xlu0 %581, %v428
  %v583 = vpop.permute.xlu0 %582
  %585 = vset.pattern.permute.xlu0 1
  %586 = vperm.xlu0 %585, %v429
  %v587 = vpop.permute.xlu0 %586
  %589 = vset.pattern.permute.xlu0 1
  %590 = vperm.xlu0 %589, %v430
  %v591 = vpop.permute.xlu0 %590
  %593 = vset.pattern.permute.xlu0 1
  %594 = vperm.xlu0 %593, %v431
  %v595 = vpop.permute.xlu0 %594
  %597 = vset.pattern.permute.xlu0 1
  %598 = vperm.xlu0 %597, %v432
  %v599 = vpop.permute.xlu0 %598
  %601 = vset.pattern.permute.xlu0 1
  %602 = vperm.xlu0 %601, %v433
  %v603 = vpop.permute.xlu0 %602
  %605 = vset.pattern.permute.xlu0 1
  %606 = vperm.xlu0 %605, %v434
  %v607 = vpop.permute.xlu0 %606
  %609 = vset.pattern.permute.xlu0 1
  %610 = vperm.xlu0 %609, %v435
  %v611 = vpop.permute.xlu0 %610
  %613 = vset.pattern.permute.xlu0 1
  %614 = vperm.xlu0 %613, %v436
  %v615 = vpop.permute.xlu0 %614
  %617 = vset.pattern.permute.xlu0 1
  %618 = vperm.xlu0 %617, %v437
  %v619 = vpop.permute.xlu0 %618
  %621 = vset.pattern.permute.xlu0 1
  %622 = vperm.xlu0 %621, %v438
  %v623 = vpop.permute.xlu0 %622
  %v625 = vlaneseq
  %v626 = vshrl.u32 %v625, 7
  %v627 = vsub.s32 1, %v626
  %v628 = vrot.slane %v560, %v627
  %v629 = vmul.f32 %v563, %v628
  %v630 = vmul.f32 %v567, %v628
  %v631 = vmul.f32 %v571, %v628
  %v632 = vmul.f32 %v575, %v628
  %v633 = vmul.f32 %v579, %v628
  %v634 = vmul.f32 %v583, %v628
  %v635 = vmul.f32 %v587, %v628
  %v636 = vmul.f32 %v591, %v628
  %v637 = vmul.f32 %v595, %v628
  %v638 = vmul.f32 %v599, %v628
  %v639 = vmul.f32 %v603, %v628
  %v640 = vmul.f32 %v607, %v628
  %v641 = vmul.f32 %v611, %v628
  %v642 = vmul.f32 %v615, %v628
  %v643 = vmul.f32 %v619, %v628
  %v644 = vmul.f32 %v623, %v628
  %v645 = vadd.f32 %v539, %v629
  %v646 = vadd.f32 %v540, %v630
  %v647 = vadd.f32 %v541, %v631
  %v648 = vadd.f32 %v542, %v632
  %v649 = vadd.f32 %v543, %v633
  %v650 = vadd.f32 %v544, %v634
  %v651 = vadd.f32 %v545, %v635
  %v652 = vadd.f32 %v546, %v636
  %v653 = vadd.f32 %v547, %v637
  %v654 = vadd.f32 %v548, %v638
  %v655 = vadd.f32 %v549, %v639
  %v656 = vadd.f32 %v550, %v640
  %v657 = vadd.f32 %v551, %v641
  %v658 = vadd.f32 %v552, %v642
  %v659 = vadd.f32 %v553, %v643
  %v660 = vadd.f32 %v554, %v644
  %v661 = vxor.u32 %v645, 2147483648
  %v662 = vmul.f32 %v661, 1.442695
  %v663 = vpow.pop %v662
  %v664 = vadd.f32 %v663, 1.0
  %v665 = vrcp.pop %v664
  %v666 = vmul.f32 1.0, %v665
  %667 = vset.pattern.permute.xlu0 2
  %668 = vperm.xlu0 %667, %v423
  %v669 = vpop.permute.xlu0 %668
  %671 = vset.pattern.permute.xlu0 2
  %672 = vperm.xlu0 %671, %v424
  %v673 = vpop.permute.xlu0 %672
  %675 = vset.pattern.permute.xlu0 2
  %676 = vperm.xlu0 %675, %v425
  %v677 = vpop.permute.xlu0 %676
  %679 = vset.pattern.permute.xlu0 2
  %680 = vperm.xlu0 %679, %v426
  %v681 = vpop.permute.xlu0 %680
  %683 = vset.pattern.permute.xlu0 2
  %684 = vperm.xlu0 %683, %v427
  %v685 = vpop.permute.xlu0 %684
  %687 = vset.pattern.permute.xlu0 2
  %688 = vperm.xlu0 %687, %v428
  %v689 = vpop.permute.xlu0 %688
  %691 = vset.pattern.permute.xlu0 2
  %692 = vperm.xlu0 %691, %v429
  %v693 = vpop.permute.xlu0 %692
  %695 = vset.pattern.permute.xlu0 2
  %696 = vperm.xlu0 %695, %v430
  %v697 = vpop.permute.xlu0 %696
  %699 = vset.pattern.permute.xlu0 2
  %700 = vperm.xlu0 %699, %v431
  %v701 = vpop.permute.xlu0 %700
  %703 = vset.pattern.permute.xlu0 2
  %704 = vperm.xlu0 %703, %v432
  %v705 = vpop.permute.xlu0 %704
  %707 = vset.pattern.permute.xlu0 2
  %708 = vperm.xlu0 %707, %v433
  %v709 = vpop.permute.xlu0 %708
  %711 = vset.pattern.permute.xlu0 2
  %712 = vperm.xlu0 %711, %v434
  %v713 = vpop.permute.xlu0 %712
  %715 = vset.pattern.permute.xlu0 2
  %716 = vperm.xlu0 %715, %v435
  %v717 = vpop.permute.xlu0 %716
  %719 = vset.pattern.permute.xlu0 2
  %720 = vperm.xlu0 %719, %v436
  %v721 = vpop.permute.xlu0 %720
  %723 = vset.pattern.permute.xlu0 2
  %724 = vperm.xlu0 %723, %v437
  %v725 = vpop.permute.xlu0 %724
  %727 = vset.pattern.permute.xlu0 2
  %728 = vperm.xlu0 %727, %v438
  %v729 = vpop.permute.xlu0 %728
  %v731 = vlaneseq
  %v732 = vshrl.u32 %v731, 7
  %v733 = vsub.s32 2, %v732
  %v734 = vrot.slane %v666, %v733
  %v735 = vmul.f32 %v669, %v734
  %v736 = vmul.f32 %v673, %v734
  %v737 = vmul.f32 %v677, %v734
  %v738 = vmul.f32 %v681, %v734
  %v739 = vmul.f32 %v685, %v734
  %v740 = vmul.f32 %v689, %v734
  %v741 = vmul.f32 %v693, %v734
  %v742 = vmul.f32 %v697, %v734
  %v743 = vmul.f32 %v701, %v734
  %v744 = vmul.f32 %v705, %v734
  %v745 = vmul.f32 %v709, %v734
  %v746 = vmul.f32 %v713, %v734
  %v747 = vmul.f32 %v717, %v734
  %v748 = vmul.f32 %v721, %v734
  %v749 = vmul.f32 %v725, %v734
  %v750 = vmul.f32 %v729, %v734
  %v751 = vadd.f32 %v645, %v735
  %v752 = vadd.f32 %v646, %v736
  %v753 = vadd.f32 %v647, %v737
  %v754 = vadd.f32 %v648, %v738
  %v755 = vadd.f32 %v649, %v739
  %v756 = vadd.f32 %v650, %v740
  %v757 = vadd.f32 %v651, %v741
  %v758 = vadd.f32 %v652, %v742
  %v759 = vadd.f32 %v653, %v743
  %v760 = vadd.f32 %v654, %v744
  %v761 = vadd.f32 %v655, %v745
  %v762 = vadd.f32 %v656, %v746
  %v763 = vadd.f32 %v657, %v747
  %v764 = vadd.f32 %v658, %v748
  %v765 = vadd.f32 %v659, %v749
  %v766 = vadd.f32 %v660, %v750
  %v767 = vxor.u32 %v751, 2147483648
  %v768 = vmul.f32 %v767, 1.442695
  %v769 = vpow.pop %v768
  %v770 = vadd.f32 %v769, 1.0
  %v771 = vrcp.pop %v770
  %v772 = vmul.f32 1.0, %v771
  %773 = vset.pattern.permute.xlu0 3
  %774 = vperm.xlu0 %773, %v423
  %v775 = vpop.permute.xlu0 %774
  %777 = vset.pattern.permute.xlu0 3
  %778 = vperm.xlu0 %777, %v424
  %v779 = vpop.permute.xlu0 %778
  %781 = vset.pattern.permute.xlu0 3
  %782 = vperm.xlu0 %781, %v425
  %v783 = vpop.permute.xlu0 %782
  %785 = vset.pattern.permute.xlu0 3
  %786 = vperm.xlu0 %785, %v426
  %v787 = vpop.permute.xlu0 %786
  %789 = vset.pattern.permute.xlu0 3
  %790 = vperm.xlu0 %789, %v427
  %v791 = vpop.permute.xlu0 %790
  %793 = vset.pattern.permute.xlu0 3
  %794 = vperm.xlu0 %793, %v428
  %v795 = vpop.permute.xlu0 %794
  %797 = vset.pattern.permute.xlu0 3
  %798 = vperm.xlu0 %797, %v429
  %v799 = vpop.permute.xlu0 %798
  %801 = vset.pattern.permute.xlu0 3
  %802 = vperm.xlu0 %801, %v430
  %v803 = vpop.permute.xlu0 %802
  %805 = vset.pattern.permute.xlu0 3
  %806 = vperm.xlu0 %805, %v431
  %v807 = vpop.permute.xlu0 %806
  %809 = vset.pattern.permute.xlu0 3
  %810 = vperm.xlu0 %809, %v432
  %v811 = vpop.permute.xlu0 %810
  %813 = vset.pattern.permute.xlu0 3
  %814 = vperm.xlu0 %813, %v433
  %v815 = vpop.permute.xlu0 %814
  %817 = vset.pattern.permute.xlu0 3
  %818 = vperm.xlu0 %817, %v434
  %v819 = vpop.permute.xlu0 %818
  %821 = vset.pattern.permute.xlu0 3
  %822 = vperm.xlu0 %821, %v435
  %v823 = vpop.permute.xlu0 %822
  %825 = vset.pattern.permute.xlu0 3
  %826 = vperm.xlu0 %825, %v436
  %v827 = vpop.permute.xlu0 %826
  %829 = vset.pattern.permute.xlu0 3
  %830 = vperm.xlu0 %829, %v437
  %v831 = vpop.permute.xlu0 %830
  %833 = vset.pattern.permute.xlu0 3
  %834 = vperm.xlu0 %833, %v438
  %v835 = vpop.permute.xlu0 %834
  %v837 = vlaneseq
  %v838 = vshrl.u32 %v837, 7
  %v839 = vsub.s32 3, %v838
  %v840 = vrot.slane %v772, %v839
  %v841 = vmul.f32 %v775, %v840
  %v842 = vmul.f32 %v779, %v840
  %v843 = vmul.f32 %v783, %v840
  %v844 = vmul.f32 %v787, %v840
  %v845 = vmul.f32 %v791, %v840
  %v846 = vmul.f32 %v795, %v840
  %v847 = vmul.f32 %v799, %v840
  %v848 = vmul.f32 %v803, %v840
  %v849 = vmul.f32 %v807, %v840
  %v850 = vmul.f32 %v811, %v840
  %v851 = vmul.f32 %v815, %v840
  %v852 = vmul.f32 %v819, %v840
  %v853 = vmul.f32 %v823, %v840
  %v854 = vmul.f32 %v827, %v840
  %v855 = vmul.f32 %v831, %v840
  %v856 = vmul.f32 %v835, %v840
  %v857 = vadd.f32 %v751, %v841
  %v858 = vadd.f32 %v752, %v842
  %v859 = vadd.f32 %v753, %v843
  %v860 = vadd.f32 %v754, %v844
  %v861 = vadd.f32 %v755, %v845
  %v862 = vadd.f32 %v756, %v846
  %v863 = vadd.f32 %v757, %v847
  %v864 = vadd.f32 %v758, %v848
  %v865 = vadd.f32 %v759, %v849
  %v866 = vadd.f32 %v760, %v850
  %v867 = vadd.f32 %v761, %v851
  %v868 = vadd.f32 %v762, %v852
  %v869 = vadd.f32 %v763, %v853
  %v870 = vadd.f32 %v764, %v854
  %v871 = vadd.f32 %v765, %v855
  %v872 = vadd.f32 %v766, %v856
  %v873 = vxor.u32 %v857, 2147483648
  %v874 = vmul.f32 %v873, 1.442695
  %v875 = vpow.pop %v874
  %v876 = vadd.f32 %v875, 1.0
  %v877 = vrcp.pop %v876
  %v878 = vmul.f32 1.0, %v877
  %879 = vset.pattern.permute.xlu0 4
  %880 = vperm.xlu0 %879, %v423
  %v881 = vpop.permute.xlu0 %880
  %883 = vset.pattern.permute.xlu0 4
  %884 = vperm.xlu0 %883, %v424
  %v885 = vpop.permute.xlu0 %884
  %887 = vset.pattern.permute.xlu0 4
  %888 = vperm.xlu0 %887, %v425
  %v889 = vpop.permute.xlu0 %888
  %891 = vset.pattern.permute.xlu0 4
  %892 = vperm.xlu0 %891, %v426
  %v893 = vpop.permute.xlu0 %892
  %895 = vset.pattern.permute.xlu0 4
  %896 = vperm.xlu0 %895, %v427
  %v897 = vpop.permute.xlu0 %896
  %899 = vset.pattern.permute.xlu0 4
  %900 = vperm.xlu0 %899, %v428
  %v901 = vpop.permute.xlu0 %900
  %903 = vset.pattern.permute.xlu0 4
  %904 = vperm.xlu0 %903, %v429
  %v905 = vpop.permute.xlu0 %904
  %907 = vset.pattern.permute.xlu0 4
  %908 = vperm.xlu0 %907, %v430
  %v909 = vpop.permute.xlu0 %908
  %911 = vset.pattern.permute.xlu0 4
  %912 = vperm.xlu0 %911, %v431
  %v913 = vpop.permute.xlu0 %912
  %915 = vset.pattern.permute.xlu0 4
  %916 = vperm.xlu0 %915, %v432
  %v917 = vpop.permute.xlu0 %916
  %919 = vset.pattern.permute.xlu0 4
  %920 = vperm.xlu0 %919, %v433
  %v921 = vpop.permute.xlu0 %920
  %923 = vset.pattern.permute.xlu0 4
  %924 = vperm.xlu0 %923, %v434
  %v925 = vpop.permute.xlu0 %924
  %927 = vset.pattern.permute.xlu0 4
  %928 = vperm.xlu0 %927, %v435
  %v929 = vpop.permute.xlu0 %928
  %931 = vset.pattern.permute.xlu0 4
  %932 = vperm.xlu0 %931, %v436
  %v933 = vpop.permute.xlu0 %932
  %935 = vset.pattern.permute.xlu0 4
  %936 = vperm.xlu0 %935, %v437
  %v937 = vpop.permute.xlu0 %936
  %939 = vset.pattern.permute.xlu0 4
  %940 = vperm.xlu0 %939, %v438
  %v941 = vpop.permute.xlu0 %940
  %v943 = vlaneseq
  %v944 = vshrl.u32 %v943, 7
  %v945 = vsub.s32 4, %v944
  %v946 = vrot.slane %v878, %v945
  %v947 = vmul.f32 %v881, %v946
  %v948 = vmul.f32 %v885, %v946
  %v949 = vmul.f32 %v889, %v946
  %v950 = vmul.f32 %v893, %v946
  %v951 = vmul.f32 %v897, %v946
  %v952 = vmul.f32 %v901, %v946
  %v953 = vmul.f32 %v905, %v946
  %v954 = vmul.f32 %v909, %v946
  %v955 = vmul.f32 %v913, %v946
  %v956 = vmul.f32 %v917, %v946
  %v957 = vmul.f32 %v921, %v946
  %v958 = vmul.f32 %v925, %v946
  %v959 = vmul.f32 %v929, %v946
  %v960 = vmul.f32 %v933, %v946
  %v961 = vmul.f32 %v937, %v946
  %v962 = vmul.f32 %v941, %v946
  %v963 = vadd.f32 %v857, %v947
  %v964 = vadd.f32 %v858, %v948
  %v965 = vadd.f32 %v859, %v949
  %v966 = vadd.f32 %v860, %v950
  %v967 = vadd.f32 %v861, %v951
  %v968 = vadd.f32 %v862, %v952
  %v969 = vadd.f32 %v863, %v953
  %v970 = vadd.f32 %v864, %v954
  %v971 = vadd.f32 %v865, %v955
  %v972 = vadd.f32 %v866, %v956
  %v973 = vadd.f32 %v867, %v957
  %v974 = vadd.f32 %v868, %v958
  %v975 = vadd.f32 %v869, %v959
  %v976 = vadd.f32 %v870, %v960
  %v977 = vadd.f32 %v871, %v961
  %v978 = vadd.f32 %v872, %v962
  %v979 = vxor.u32 %v963, 2147483648
  %v980 = vmul.f32 %v979, 1.442695
  %v981 = vpow.pop %v980
  %v982 = vadd.f32 %v981, 1.0
  %v983 = vrcp.pop %v982
  %v984 = vmul.f32 1.0, %v983
  %985 = vset.pattern.permute.xlu0 5
  %986 = vperm.xlu0 %985, %v423
  %v987 = vpop.permute.xlu0 %986
  %989 = vset.pattern.permute.xlu0 5
  %990 = vperm.xlu0 %989, %v424
  %v991 = vpop.permute.xlu0 %990
  %993 = vset.pattern.permute.xlu0 5
  %994 = vperm.xlu0 %993, %v425
  %v995 = vpop.permute.xlu0 %994
  %997 = vset.pattern.permute.xlu0 5
  %998 = vperm.xlu0 %997, %v426
  %v999 = vpop.permute.xlu0 %998
  %1001 = vset.pattern.permute.xlu0 5
  %1002 = vperm.xlu0 %1001, %v427
  %v1003 = vpop.permute.xlu0 %1002
  %1005 = vset.pattern.permute.xlu0 5
  %1006 = vperm.xlu0 %1005, %v428
  %v1007 = vpop.permute.xlu0 %1006
  %1009 = vset.pattern.permute.xlu0 5
  %1010 = vperm.xlu0 %1009, %v429
  %v1011 = vpop.permute.xlu0 %1010
  %1013 = vset.pattern.permute.xlu0 5
  %1014 = vperm.xlu0 %1013, %v430
  %v1015 = vpop.permute.xlu0 %1014
  %1017 = vset.pattern.permute.xlu0 5
  %1018 = vperm.xlu0 %1017, %v431
  %v1019 = vpop.permute.xlu0 %1018
  %1021 = vset.pattern.permute.xlu0 5
  %1022 = vperm.xlu0 %1021, %v432
  %v1023 = vpop.permute.xlu0 %1022
  %1025 = vset.pattern.permute.xlu0 5
  %1026 = vperm.xlu0 %1025, %v433
  %v1027 = vpop.permute.xlu0 %1026
  %1029 = vset.pattern.permute.xlu0 5
  %1030 = vperm.xlu0 %1029, %v434
  %v1031 = vpop.permute.xlu0 %1030
  %1033 = vset.pattern.permute.xlu0 5
  %1034 = vperm.xlu0 %1033, %v435
  %v1035 = vpop.permute.xlu0 %1034
  %1037 = vset.pattern.permute.xlu0 5
  %1038 = vperm.xlu0 %1037, %v436
  %v1039 = vpop.permute.xlu0 %1038
  %1041 = vset.pattern.permute.xlu0 5
  %1042 = vperm.xlu0 %1041, %v437
  %v1043 = vpop.permute.xlu0 %1042
  %1045 = vset.pattern.permute.xlu0 5
  %1046 = vperm.xlu0 %1045, %v438
  %v1047 = vpop.permute.xlu0 %1046
  %v1049 = vlaneseq
  %v1050 = vshrl.u32 %v1049, 7
  %v1051 = vsub.s32 5, %v1050
  %v1052 = vrot.slane %v984, %v1051
  %v1053 = vmul.f32 %v987, %v1052
  %v1054 = vmul.f32 %v991, %v1052
  %v1055 = vmul.f32 %v995, %v1052
  %v1056 = vmul.f32 %v999, %v1052
  %v1057 = vmul.f32 %v1003, %v1052
  %v1058 = vmul.f32 %v1007, %v1052
  %v1059 = vmul.f32 %v1011, %v1052
  %v1060 = vmul.f32 %v1015, %v1052
  %v1061 = vmul.f32 %v1019, %v1052
  %v1062 = vmul.f32 %v1023, %v1052
  %v1063 = vmul.f32 %v1027, %v1052
  %v1064 = vmul.f32 %v1031, %v1052
  %v1065 = vmul.f32 %v1035, %v1052
  %v1066 = vmul.f32 %v1039, %v1052
  %v1067 = vmul.f32 %v1043, %v1052
  %v1068 = vmul.f32 %v1047, %v1052
  %v1069 = vadd.f32 %v963, %v1053
  %v1070 = vadd.f32 %v964, %v1054
  %v1071 = vadd.f32 %v965, %v1055
  %v1072 = vadd.f32 %v966, %v1056
  %v1073 = vadd.f32 %v967, %v1057
  %v1074 = vadd.f32 %v968, %v1058
  %v1075 = vadd.f32 %v969, %v1059
  %v1076 = vadd.f32 %v970, %v1060
  %v1077 = vadd.f32 %v971, %v1061
  %v1078 = vadd.f32 %v972, %v1062
  %v1079 = vadd.f32 %v973, %v1063
  %v1080 = vadd.f32 %v974, %v1064
  %v1081 = vadd.f32 %v975, %v1065
  %v1082 = vadd.f32 %v976, %v1066
  %v1083 = vadd.f32 %v977, %v1067
  %v1084 = vadd.f32 %v978, %v1068
  %v1085 = vxor.u32 %v1069, 2147483648
  %v1086 = vmul.f32 %v1085, 1.442695
  %v1087 = vpow.pop %v1086
  %v1088 = vadd.f32 %v1087, 1.0
  %v1089 = vrcp.pop %v1088
  %v1090 = vmul.f32 1.0, %v1089
  %1091 = vset.pattern.permute.xlu0 6
  %1092 = vperm.xlu0 %1091, %v423
  %v1093 = vpop.permute.xlu0 %1092
  %1095 = vset.pattern.permute.xlu0 6
  %1096 = vperm.xlu0 %1095, %v424
  %v1097 = vpop.permute.xlu0 %1096
  %1099 = vset.pattern.permute.xlu0 6
  %1100 = vperm.xlu0 %1099, %v425
  %v1101 = vpop.permute.xlu0 %1100
  %1103 = vset.pattern.permute.xlu0 6
  %1104 = vperm.xlu0 %1103, %v426
  %v1105 = vpop.permute.xlu0 %1104
  %1107 = vset.pattern.permute.xlu0 6
  %1108 = vperm.xlu0 %1107, %v427
  %v1109 = vpop.permute.xlu0 %1108
  %1111 = vset.pattern.permute.xlu0 6
  %1112 = vperm.xlu0 %1111, %v428
  %v1113 = vpop.permute.xlu0 %1112
  %1115 = vset.pattern.permute.xlu0 6
  %1116 = vperm.xlu0 %1115, %v429
  %v1117 = vpop.permute.xlu0 %1116
  %1119 = vset.pattern.permute.xlu0 6
  %1120 = vperm.xlu0 %1119, %v430
  %v1121 = vpop.permute.xlu0 %1120
  %1123 = vset.pattern.permute.xlu0 6
  %1124 = vperm.xlu0 %1123, %v431
  %v1125 = vpop.permute.xlu0 %1124
  %1127 = vset.pattern.permute.xlu0 6
  %1128 = vperm.xlu0 %1127, %v432
  %v1129 = vpop.permute.xlu0 %1128
  %1131 = vset.pattern.permute.xlu0 6
  %1132 = vperm.xlu0 %1131, %v433
  %v1133 = vpop.permute.xlu0 %1132
  %1135 = vset.pattern.permute.xlu0 6
  %1136 = vperm.xlu0 %1135, %v434
  %v1137 = vpop.permute.xlu0 %1136
  %1139 = vset.pattern.permute.xlu0 6
  %1140 = vperm.xlu0 %1139, %v435
  %v1141 = vpop.permute.xlu0 %1140
  %1143 = vset.pattern.permute.xlu0 6
  %1144 = vperm.xlu0 %1143, %v436
  %v1145 = vpop.permute.xlu0 %1144
  %1147 = vset.pattern.permute.xlu0 6
  %1148 = vperm.xlu0 %1147, %v437
  %v1149 = vpop.permute.xlu0 %1148
  %1151 = vset.pattern.permute.xlu0 6
  %1152 = vperm.xlu0 %1151, %v438
  %v1153 = vpop.permute.xlu0 %1152
  %v1155 = vlaneseq
  %v1156 = vshrl.u32 %v1155, 7
  %v1157 = vsub.s32 6, %v1156
  %v1158 = vrot.slane %v1090, %v1157
  %v1159 = vmul.f32 %v1093, %v1158
  %v1160 = vmul.f32 %v1097, %v1158
  %v1161 = vmul.f32 %v1101, %v1158
  %v1162 = vmul.f32 %v1105, %v1158
  %v1163 = vmul.f32 %v1109, %v1158
  %v1164 = vmul.f32 %v1113, %v1158
  %v1165 = vmul.f32 %v1117, %v1158
  %v1166 = vmul.f32 %v1121, %v1158
  %v1167 = vmul.f32 %v1125, %v1158
  %v1168 = vmul.f32 %v1129, %v1158
  %v1169 = vmul.f32 %v1133, %v1158
  %v1170 = vmul.f32 %v1137, %v1158
  %v1171 = vmul.f32 %v1141, %v1158
  %v1172 = vmul.f32 %v1145, %v1158
  %v1173 = vmul.f32 %v1149, %v1158
  %v1174 = vmul.f32 %v1153, %v1158
  %v1175 = vadd.f32 %v1069, %v1159
  %v1176 = vadd.f32 %v1070, %v1160
  %v1177 = vadd.f32 %v1071, %v1161
  %v1178 = vadd.f32 %v1072, %v1162
  %v1179 = vadd.f32 %v1073, %v1163
  %v1180 = vadd.f32 %v1074, %v1164
  %v1181 = vadd.f32 %v1075, %v1165
  %v1182 = vadd.f32 %v1076, %v1166
  %v1183 = vadd.f32 %v1077, %v1167
  %v1184 = vadd.f32 %v1078, %v1168
  %v1185 = vadd.f32 %v1079, %v1169
  %v1186 = vadd.f32 %v1080, %v1170
  %v1187 = vadd.f32 %v1081, %v1171
  %v1188 = vadd.f32 %v1082, %v1172
  %v1189 = vadd.f32 %v1083, %v1173
  %v1190 = vadd.f32 %v1084, %v1174
  %vm1191 = vcmask 64512
  %1192 = vst.msk [vmem:[%s6] sm:$0xff] %vm1191, %v1175
  %1193 = vst.msk [vmem:[%s6 + $0x8] sm:$0xff] %vm1191, %v1176
  %1194 = vst.msk [vmem:[%s6 + $0x10] sm:$0xff] %vm1191, %v1177
  %1195 = vst.msk [vmem:[%s6 + $0x18] sm:$0xff] %vm1191, %v1178
  %1196 = vst.msk [vmem:[%s6 + $0x20] sm:$0xff] %vm1191, %v1179
  %1197 = vst.msk [vmem:[%s6 + $0x28] sm:$0xff] %vm1191, %v1180
  %1198 = vst.msk [vmem:[%s6 + $0x30] sm:$0xff] %vm1191, %v1181
  %1199 = vst.msk [vmem:[%s6 + $0x38] sm:$0xff] %vm1191, %v1182
  %1200 = vst.msk [vmem:[%s6 + $0x40] sm:$0xff] %vm1191, %v1183
  %1201 = vst.msk [vmem:[%s6 + $0x48] sm:$0xff] %vm1191, %v1184
  %1202 = vst.msk [vmem:[%s6 + $0x50] sm:$0xff] %vm1191, %v1185
  %1203 = vst.msk [vmem:[%s6 + $0x58] sm:$0xff] %vm1191, %v1186
  %1204 = vst.msk [vmem:[%s6 + $0x60] sm:$0xff] %vm1191, %v1187
  %1205 = vst.msk [vmem:[%s6 + $0x68] sm:$0xff] %vm1191, %v1188
  %1206 = vst.msk [vmem:[%s6 + $0x70] sm:$0xff] %vm1191, %v1189
  %1207 = vst.msk [vmem:[%s6 + $0x78] sm:$0xff] %vm1191, %v1190
  // Predicated region
  $region26: #{tpu_custom_call.1} parent=0 // pred_check
    _
  $region27: #{tpu_custom_call.1} parent=0 // pred_check_branch
    %1209 = sbr.rel (0) target = $region29
  $region28: #{tpu_custom_call.1} parent=0 // pred_region
    _
  $region29: #{tpu_custom_call.1} parent=0 // pred_fallthru
    _
  // Predicated region
  $region30: #{tpu_custom_call.1} parent=0 // pred_check
    _
  $region31: #{tpu_custom_call.1} parent=0 // pred_check_branch
    %1211 = sbr.rel (0) target = $region33
  $region32: #{tpu_custom_call.1} parent=0 // pred_region
    _
  $region33: #{tpu_custom_call.1} parent=0 // pred_fallthru
    _

// kernel: tpu_custom_call.1
$region0: #{tpu_custom_call.1}
  #allocation0 [shape = 'u32[]', space=smem, size = 0x4, offset = 0x4, fixed_abs, tag = 'smem constant byte address 0x4 - core index']
  #allocation1 [shape = 'u32[144,128]{1,0:T(1,128)}', space=vmem, size = 0x12000, scoped, tag = 'internal scratch']
  %s0 = inlined_call_operand.vmem [shape: f32[8,16], index: 0, kind: input, shape index: {}]
  %s1 = inlined_call_operand.vmem [shape: f32[16,32], index: 1, kind: input, shape index: {}]
  %s2 = inlined_call_operand.vmem [shape: f32[1,32], index: 2, kind: input, shape index: {}]
  %s3 = inlined_call_operand.vmem [shape: f32[128,32], index: 3, kind: input, shape index: {}]
  %s4 = inlined_call_operand.vmem [shape: f32[128,8], index: 4, kind: input, shape index: {}]
  %s5 = inlined_call_operand.vmem [shape: f32[128,1], index: 5, kind: input, shape index: {}]
  %s6 = inlined_call_operand.vmem [shape: f32[128,8], index: 6, kind: output, shape index: {}]
  %s7 = sld [smem:[#allocation0]]
  $region34: #{tpu_custom_call.1} parent=0
    _
  %s9 = ssub.s32 1, %s7
  %s10 = scalar_select 0, %s9, %s7
  // Predicated region
  $region2: #{tpu_custom_call.1} parent=0 // pred_check
    _
  $region3: #{tpu_custom_call.1} parent=0 // pred_check_branch
    %12 = sbr.rel (0) target = $region5
  $region4: #{tpu_custom_call.1} parent=0 // pred_region
    _
  $region5: #{tpu_custom_call.1} parent=0 // pred_fallthru
    _
  // Predicated region
  $region6: #{tpu_custom_call.1} parent=0 // pred_check
    _
  $region7: #{tpu_custom_call.1} parent=0 // pred_check_branch
    %14 = sbr.rel (0) target = $region9
  $region8: #{tpu_custom_call.1} parent=0 // pred_region
    _
  $region9: #{tpu_custom_call.1} parent=0 // pred_fallthru
    _
  // Predicated region
  $region10: #{tpu_custom_call.1} parent=0 // pred_check
    _
  $region11: #{tpu_custom_call.1} parent=0 // pred_check_branch
    %16 = sbr.rel (0) target = $region13
  $region12: #{tpu_custom_call.1} parent=0 // pred_region
    _
  $region13: #{tpu_custom_call.1} parent=0 // pred_fallthru
    _
  // Predicated region
  $region14: #{tpu_custom_call.1} parent=0 // pred_check
    _
  $region15: #{tpu_custom_call.1} parent=0 // pred_check_branch
    %18 = sbr.rel (0) target = $region17
  $region16: #{tpu_custom_call.1} parent=0 // pred_region
    _
  $region17: #{tpu_custom_call.1} parent=0 // pred_fallthru
    _
  // Predicated region
  $region18: #{tpu_custom_call.1} parent=0 // pred_check
    _
  $region19: #{tpu_custom_call.1} parent=0 // pred_check_branch
    %20 = sbr.rel (0) target = $region21
  $region20: #{tpu_custom_call.1} parent=0 // pred_region
    _
  $region21: #{tpu_custom_call.1} parent=0 // pred_fallthru
    _
  // Predicated region
  $region22: #{tpu_custom_call.1} parent=0 // pred_check
    _
  $region23: #{tpu_custom_call.1} parent=0 // pred_check_branch
    %22 = sbr.rel (0) target = $region25
  $region24: #{tpu_custom_call.1} parent=0 // pred_region
    _
  $region25: #{tpu_custom_call.1} parent=0 // pred_fallthru
    _
  %v23 = vld [vmem:[%s0] sm:$0xff]
  %v24 = vld [vmem:[%s1] sm:$0xff]
  %v25 = vld [vmem:[%s1 + $0x8] sm:$0xff]
  %v26 = vld [vmem:[%s2] sm:$0x1]
  %v28 = vlaneseq
  %v29 = vshrl.u32 %v28, 7
  %v30 = vsub.s32 0, %v29
  %v31 = vrot.slane %v26, %v30
  %vm33 = vcmask 130048
  %v35 = vsel %vm33, %v23, 0
  %37 = vmatprep.subr.mxu0 0.0
  %38 = vmatpush1.msra.mxu0 %v24
  %39 = vmatprep.subr.mxu0 0.0
  %40 = vmatpush1.msra.mxu0 %v25
  %41 = vmatprep.subr.mxu0 0.0
  %42 = vmatpush1.msra.mxu0 0.0
  %43 = vmatprep.subr.mxu0 0.0
  %44 = vmatpush1.msra.mxu0 0.0
  %45 = vmatprep.subr.mxu0 0.0
  %46 = vmatpush1.msra.mxu0 0.0
  %47 = vmatprep.subr.mxu0 0.0
  %48 = vmatpush1.msra.mxu0 0.0
  %49 = vmatprep.subr.mxu0 0.0
  %50 = vmatpush1.msra.mxu0 0.0
  %51 = vmatprep.subr.mxu0 0.0
  %52 = vmatpush1.msra.mxu0 0.0
  %53 = vmatprep.subr.mxu0 0.0
  %54 = vmatpush1.msra.mxu0 0.0
  %55 = vmatprep.subr.mxu0 0.0
  %56 = vmatpush1.msra.mxu0 0.0
  %57 = vmatprep.subr.mxu0 0.0
  %58 = vmatpush1.msra.mxu0 0.0
  %59 = vmatprep.subr.mxu0 0.0
  %60 = vmatpush1.msra.mxu0 0.0
  %61 = vmatprep.subr.mxu0 0.0
  %62 = vmatpush1.msra.mxu0 0.0
  %63 = vmatprep.subr.mxu0 0.0
  %64 = vmatpush1.msra.mxu0 0.0
  %65 = vmatprep.subr.mxu0 0.0
  %66 = vmatpush1.msra.mxu0 0.0
  %67 = vmatprep.subr.mxu0 0.0
  %68 = vmatpush1.msra.mxu0 0.0
  %69 = vmatprep.subr.mxu0 0.0
  %70 = vmatpush1.msra.mxu0 0.0
  %71 = vmatprep.subr.mxu0 0.0
  %72 = vmatpush1.msra.mxu0 0.0
  %73 = vmatprep.subr.mxu0 0.0
  %74 = vmatpush1.msra.mxu0 0.0
  %75 = vmatprep.subr.mxu0 0.0
  %76 = vmatpush1.msra.mxu0 0.0
  %77 = vmatprep.subr.mxu0 0.0
  %78 = vmatpush1.msra.mxu0 0.0
  %79 = vmatprep.subr.mxu0 0.0
  %80 = vmatpush1.msra.mxu0 0.0
  %81 = vmatprep.subr.mxu0 0.0
  %82 = vmatpush1.msra.mxu0 0.0
  %83 = vmatprep.subr.mxu0 0.0
  %84 = vmatpush1.msra.mxu0 0.0
  %85 = vmatprep.subr.mxu0 0.0
  %86 = vmatpush1.msra.mxu0 0.0
  %87 = vmatprep.subr.mxu0 0.0
  %88 = vmatpush1.msra.mxu0 0.0
  %89 = vmatprep.subr.mxu0 0.0
  %90 = vmatpush1.msra.mxu0 0.0
  %91 = vmatprep.subr.mxu0 0.0
  %92 = vmatpush1.msra.mxu0 0.0
  %93 = vmatprep.subr.mxu0 0.0
  %94 = vmatpush1.msra.mxu0 0.0
  %95 = vmatprep.subr.mxu0 0.0
  %96 = vmatpush1.msra.mxu0 0.0
  %97 = vmatprep.subr.mxu0 0.0
  %98 = vmatpush1.msra.mxu0 0.0
  %99 = vmatprep.subr.mxu0 0.0
  %100 = vmatpush1.msra.mxu0 0.0
  %101 = vmatprep.mubr.f32.mxu0 0.0
  %102 = vmatmul.mubr.f32.gmra.mrb[0].mxu0 %v35
  %v103 = vpop.f32.mrb[0].mxu0
  %v104 = vadd.f32 %v31, %v103
  %v105 = vpop.f32.mrb[0].mxu0
  %106 = vdwg.mxu0
  %v107 = vmax.f32 %v104, 0.0
  %v108 = vld [vmem:[%s3] sm:$0xff]
  %v109 = vld [vmem:[%s3 + $0x8] sm:$0xff]
  %v110 = vld [vmem:[%s3 + $0x10] sm:$0xff]
  %v111 = vld [vmem:[%s3 + $0x18] sm:$0xff]
  %v112 = vld [vmem:[%s3 + $0x20] sm:$0xff]
  %v113 = vld [vmem:[%s3 + $0x28] sm:$0xff]
  %v114 = vld [vmem:[%s3 + $0x30] sm:$0xff]
  %v115 = vld [vmem:[%s3 + $0x38] sm:$0xff]
  %v116 = vld [vmem:[%s3 + $0x40] sm:$0xff]
  %v117 = vld [vmem:[%s3 + $0x48] sm:$0xff]
  %v118 = vld [vmem:[%s3 + $0x50] sm:$0xff]
  %v119 = vld [vmem:[%s3 + $0x58] sm:$0xff]
  %v120 = vld [vmem:[%s3 + $0x60] sm:$0xff]
  %v121 = vld [vmem:[%s3 + $0x68] sm:$0xff]
  %v122 = vld [vmem:[%s3 + $0x70] sm:$0xff]
  %v123 = vld [vmem:[%s3 + $0x78] sm:$0xff]
  %v124 = vld [vmem:[%s5] sm:$0xff]
  %v125 = vld [vmem:[%s5 + $0x8] sm:$0xff]
  %v126 = vld [vmem:[%s5 + $0x10] sm:$0xff]
  %v127 = vld [vmem:[%s5 + $0x18] sm:$0xff]
  %v128 = vld [vmem:[%s5 + $0x20] sm:$0xff]
  %v129 = vld [vmem:[%s5 + $0x28] sm:$0xff]
  %v130 = vld [vmem:[%s5 + $0x30] sm:$0xff]
  %v131 = vld [vmem:[%s5 + $0x38] sm:$0xff]
  %v132 = vld [vmem:[%s5 + $0x40] sm:$0xff]
  %v133 = vld [vmem:[%s5 + $0x48] sm:$0xff]
  %v134 = vld [vmem:[%s5 + $0x50] sm:$0xff]
  %v135 = vld [vmem:[%s5 + $0x58] sm:$0xff]
  %v136 = vld [vmem:[%s5 + $0x60] sm:$0xff]
  %v137 = vld [vmem:[%s5 + $0x68] sm:$0xff]
  %v138 = vld [vmem:[%s5 + $0x70] sm:$0xff]
  %v139 = vld [vmem:[%s5 + $0x78] sm:$0xff]
  %141 = vset.pattern.permute.xlu0 0
  %142 = vperm.xlu0 %141, %v124
  %v143 = vpop.permute.xlu0 %142
  %146 = vset.pattern.permute.xlu0 0
  %147 = vperm.xlu0 %146, %v125
  %v148 = vpop.permute.xlu0 %147
  %151 = vset.pattern.permute.xlu0 0
  %152 = vperm.xlu0 %151, %v126
  %v153 = vpop.permute.xlu0 %152
  %156 = vset.pattern.permute.xlu0 0
  %157 = vperm.xlu0 %156, %v127
  %v158 = vpop.permute.xlu0 %157
  %161 = vset.pattern.permute.xlu0 0
  %162 = vperm.xlu0 %161, %v128
  %v163 = vpop.permute.xlu0 %162
  %166 = vset.pattern.permute.xlu0 0
  %167 = vperm.xlu0 %166, %v129
  %v168 = vpop.permute.xlu0 %167
  %171 = vset.pattern.permute.xlu0 0
  %172 = vperm.xlu0 %171, %v130
  %v173 = vpop.permute.xlu0 %172
  %176 = vset.pattern.permute.xlu0 0
  %177 = vperm.xlu0 %176, %v131
  %v178 = vpop.permute.xlu0 %177
  %181 = vset.pattern.permute.xlu0 0
  %182 = vperm.xlu0 %181, %v132
  %v183 = vpop.permute.xlu0 %182
  %186 = vset.pattern.permute.xlu0 0
  %187 = vperm.xlu0 %186, %v133
  %v188 = vpop.permute.xlu0 %187
  %191 = vset.pattern.permute.xlu0 0
  %192 = vperm.xlu0 %191, %v134
  %v193 = vpop.permute.xlu0 %192
  %196 = vset.pattern.permute.xlu0 0
  %197 = vperm.xlu0 %196, %v135
  %v198 = vpop.permute.xlu0 %197
  %201 = vset.pattern.permute.xlu0 0
  %202 = vperm.xlu0 %201, %v136
  %v203 = vpop.permute.xlu0 %202
  %206 = vset.pattern.permute.xlu0 0
  %207 = vperm.xlu0 %206, %v137
  %v208 = vpop.permute.xlu0 %207
  %211 = vset.pattern.permute.xlu0 0
  %212 = vperm.xlu0 %211, %v138
  %v213 = vpop.permute.xlu0 %212
  %216 = vset.pattern.permute.xlu0 0
  %217 = vperm.xlu0 %216, %v139
  %v218 = vpop.permute.xlu0 %217
  %vm220 = vcmask 261120
  %v222 = vsel %vm220, %v108, 0
  %v225 = vsel %vm220, %v109, 0
  %v228 = vsel %vm220, %v110, 0
  %v231 = vsel %vm220, %v111, 0
  %v234 = vsel %vm220, %v112, 0
  %v237 = vsel %vm220, %v113, 0
  %v240 = vsel %vm220, %v114, 0
  %v243 = vsel %vm220, %v115, 0
  %v246 = vsel %vm220, %v116, 0
  %v249 = vsel %vm220, %v117, 0
  %v252 = vsel %vm220, %v118, 0
  %v255 = vsel %vm220, %v119, 0
  %v258 = vsel %vm220, %v120, 0
  %v261 = vsel %vm220, %v121, 0
  %v264 = vsel %vm220, %v122, 0
  %v267 = vsel %vm220, %v123, 0
  %v270 = vsel %vm220, %v107, 0
  %272 = vmatprep.subr.mxu0 0.0
  %273 = vmatpush1.xpose.msra.mxu0 %v270
  %274 = vmatprep.subr.mxu0 0.0
  %275 = vmatpush1.xpose.msra.mxu0 0.0
  %276 = vmatprep.subr.mxu0 0.0
  %277 = vmatpush1.xpose.msra.mxu0 0.0
  %278 = vmatprep.subr.mxu0 0.0
  %279 = vmatpush1.xpose.msra.mxu0 0.0
  %280 = vmatprep.subr.mxu0 0.0
  %281 = vmatpush1.xpose.msra.mxu0 0.0
  %282 = vmatprep.subr.mxu0 0.0
  %283 = vmatpush1.xpose.msra.mxu0 0.0
  %284 = vmatprep.subr.mxu0 0.0
  %285 = vmatpush1.xpose.msra.mxu0 0.0
  %286 = vmatprep.subr.mxu0 0.0
  %287 = vmatpush1.xpose.msra.mxu0 0.0
  %288 = vmatprep.subr.mxu0 0.0
  %289 = vmatpush1.xpose.msra.mxu0 0.0
  %290 = vmatprep.subr.mxu0 0.0
  %291 = vmatpush1.xpose.msra.mxu0 0.0
  %292 = vmatprep.subr.mxu0 0.0
  %293 = vmatpush1.xpose.msra.mxu0 0.0
  %294 = vmatprep.subr.mxu0 0.0
  %295 = vmatpush1.xpose.msra.mxu0 0.0
  %296 = vmatprep.subr.mxu0 0.0
  %297 = vmatpush1.xpose.msra.mxu0 0.0
  %298 = vmatprep.subr.mxu0 0.0
  %299 = vmatpush1.xpose.msra.mxu0 0.0
  %300 = vmatprep.subr.mxu0 0.0
  %301 = vmatpush1.xpose.msra.mxu0 0.0
  %302 = vmatprep.subr.mxu0 0.0
  %303 = vmatpush1.xpose.msra.mxu0 0.0
  %304 = vmatprep.subr.mxu0 0.0
  %305 = vmatpush1.xpose.msra.mxu0 0.0
  %306 = vmatprep.subr.mxu0 0.0
  %307 = vmatpush1.xpose.msra.mxu0 0.0
  %308 = vmatprep.subr.mxu0 0.0
  %309 = vmatpush1.xpose.msra.mxu0 0.0
  %310 = vmatprep.subr.mxu0 0.0
  %311 = vmatpush1.xpose.msra.mxu0 0.0
  %312 = vmatprep.subr.mxu0 0.0
  %313 = vmatpush1.xpose.msra.mxu0 0.0
  %314 = vmatprep.subr.mxu0 0.0
  %315 = vmatpush1.xpose.msra.mxu0 0.0
  %316 = vmatprep.subr.mxu0 0.0
  %317 = vmatpush1.xpose.msra.mxu0 0.0
  %318 = vmatprep.subr.mxu0 0.0
  %319 = vmatpush1.xpose.msra.mxu0 0.0
  %320 = vmatprep.subr.mxu0 0.0
  %321 = vmatpush1.xpose.msra.mxu0 0.0
  %322 = vmatprep.subr.mxu0 0.0
  %323 = vmatpush1.xpose.msra.mxu0 0.0
  %324 = vmatprep.subr.mxu0 0.0
  %325 = vmatpush1.xpose.msra.mxu0 0.0
  %326 = vmatprep.subr.mxu0 0.0
  %327 = vmatpush1.xpose.msra.mxu0 0.0
  %328 = vmatprep.subr.mxu0 0.0
  %329 = vmatpush1.xpose.msra.mxu0 0.0
  %330 = vmatprep.subr.mxu0 0.0
  %331 = vmatpush1.xpose.msra.mxu0 0.0
  %332 = vmatprep.subr.mxu0 0.0
  %333 = vmatpush1.xpose.msra.mxu0 0.0
  %334 = vmatprep.subr.mxu0 0.0
  %335 = vmatpush1.xpose.msra.mxu0 0.0
  %336 = vmatprep.mubr.f32.mxu0 0.0
  %337 = vmatmul.mubr.f32.gmra.mrb[0].mxu0 %v222
  %v338 = vpop.f32.mrb[0].mxu0
  %v339 = vadd.f32 %v143, %v338
  %v340 = vpop.f32.mrb[0].mxu0
  %341 = vmatprep.mubr.f32.mxu0 0.0
  %342 = vmatmul.mubr.f32.gmra.mrb[0].mxu0 %v225
  %v343 = vpop.f32.mrb[0].mxu0
  %v344 = vadd.f32 %v148, %v343
  %v345 = vpop.f32.mrb[0].mxu0
  %346 = vmatprep.mubr.f32.mxu0 0.0
  %347 = vmatmul.mubr.f32.gmra.mrb[0].mxu0 %v228
  %v348 = vpop.f32.mrb[0].mxu0
  %v349 = vadd.f32 %v153, %v348
  %v350 = vpop.f32.mrb[0].mxu0
  %351 = vmatprep.mubr.f32.mxu0 0.0
  %352 = vmatmul.mubr.f32.gmra.mrb[0].mxu0 %v231
  %v353 = vpop.f32.mrb[0].mxu0
  %v354 = vadd.f32 %v158, %v353
  %v355 = vpop.f32.mrb[0].mxu0
  %356 = vmatprep.mubr.f32.mxu0 0.0
  %357 = vmatmul.mubr.f32.gmra.mrb[0].mxu0 %v234
  %v358 = vpop.f32.mrb[0].mxu0
  %v359 = vadd.f32 %v163, %v358
  %v360 = vpop.f32.mrb[0].mxu0
  %361 = vmatprep.mubr.f32.mxu0 0.0
  %362 = vmatmul.mubr.f32.gmra.mrb[0].mxu0 %v237
  %v363 = vpop.f32.mrb[0].mxu0
  %v364 = vadd.f32 %v168, %v363
  %v365 = vpop.f32.mrb[0].mxu0
  %366 = vmatprep.mubr.f32.mxu0 0.0
  %367 = vmatmul.mubr.f32.gmra.mrb[0].mxu0 %v240
  %v368 = vpop.f32.mrb[0].mxu0
  %v369 = vadd.f32 %v173, %v368
  %v370 = vpop.f32.mrb[0].mxu0
  %371 = vmatprep.mubr.f32.mxu0 0.0
  %372 = vmatmul.mubr.f32.gmra.mrb[0].mxu0 %v243
  %v373 = vpop.f32.mrb[0].mxu0
  %v374 = vadd.f32 %v178, %v373
  %v375 = vpop.f32.mrb[0].mxu0
  %376 = vmatprep.mubr.f32.mxu0 0.0
  %377 = vmatmul.mubr.f32.gmra.mrb[0].mxu0 %v246
  %v378 = vpop.f32.mrb[0].mxu0
  %v379 = vadd.f32 %v183, %v378
  %v380 = vpop.f32.mrb[0].mxu0
  %381 = vmatprep.mubr.f32.mxu0 0.0
  %382 = vmatmul.mubr.f32.gmra.mrb[0].mxu0 %v249
  %v383 = vpop.f32.mrb[0].mxu0
  %v384 = vadd.f32 %v188, %v383
  %v385 = vpop.f32.mrb[0].mxu0
  %386 = vmatprep.mubr.f32.mxu0 0.0
  %387 = vmatmul.mubr.f32.gmra.mrb[0].mxu0 %v252
  %v388 = vpop.f32.mrb[0].mxu0
  %v389 = vadd.f32 %v193, %v388
  %v390 = vpop.f32.mrb[0].mxu0
  %391 = vmatprep.mubr.f32.mxu0 0.0
  %392 = vmatmul.mubr.f32.gmra.mrb[0].mxu0 %v255
  %v393 = vpop.f32.mrb[0].mxu0
  %v394 = vadd.f32 %v198, %v393
  %v395 = vpop.f32.mrb[0].mxu0
  %396 = vmatprep.mubr.f32.mxu0 0.0
  %397 = vmatmul.mubr.f32.gmra.mrb[0].mxu0 %v258
  %v398 = vpop.f32.mrb[0].mxu0
  %v399 = vadd.f32 %v203, %v398
  %v400 = vpop.f32.mrb[0].mxu0
  %401 = vmatprep.mubr.f32.mxu0 0.0
  %402 = vmatmul.mubr.f32.gmra.mrb[0].mxu0 %v261
  %v403 = vpop.f32.mrb[0].mxu0
  %v404 = vadd.f32 %v208, %v403
  %v405 = vpop.f32.mrb[0].mxu0
  %406 = vmatprep.mubr.f32.mxu0 0.0
  %407 = vmatmul.mubr.f32.gmra.mrb[0].mxu0 %v264
  %v408 = vpop.f32.mrb[0].mxu0
  %v409 = vadd.f32 %v213, %v408
  %v410 = vpop.f32.mrb[0].mxu0
  %411 = vmatprep.mubr.f32.mxu0 0.0
  %412 = vmatmul.mubr.f32.gmra.mrb[0].mxu0 %v267
  %v413 = vpop.f32.mrb[0].mxu0
  %v414 = vadd.f32 %v218, %v413
  %v415 = vpop.f32.mrb[0].mxu0
  %416 = vdwg.mxu0
  %v417 = vxor.u32 %v339, 2147483648
  %v418 = vmul.f32 %v417, 1.442695
  %v419 = vpow.pop %v418
  %v420 = vadd.f32 %v419, 1.0
  %v421 = vrcp.pop %v420
  %v422 = vmul.f32 1.0, %v421
  %v423 = vld [vmem:[%s4] sm:$0xff]
  %v424 = vld [vmem:[%s4 + $0x8] sm:$0xff]
  %v425 = vld [vmem:[%s4 + $0x10] sm:$0xff]
  %v426 = vld [vmem:[%s4 + $0x18] sm:$0xff]
  %v427 = vld [vmem:[%s4 + $0x20] sm:$0xff]
  %v428 = vld [vmem:[%s4 + $0x28] sm:$0xff]
  %v429 = vld [vmem:[%s4 + $0x30] sm:$0xff]
  %v430 = vld [vmem:[%s4 + $0x38] sm:$0xff]
  %v431 = vld [vmem:[%s4 + $0x40] sm:$0xff]
  %v432 = vld [vmem:[%s4 + $0x48] sm:$0xff]
  %v433 = vld [vmem:[%s4 + $0x50] sm:$0xff]
  %v434 = vld [vmem:[%s4 + $0x58] sm:$0xff]
  %v435 = vld [vmem:[%s4 + $0x60] sm:$0xff]
  %v436 = vld [vmem:[%s4 + $0x68] sm:$0xff]
  %v437 = vld [vmem:[%s4 + $0x70] sm:$0xff]
  %v438 = vld [vmem:[%s4 + $0x78] sm:$0xff]
  %440 = vset.pattern.permute.xlu0 0
  %441 = vperm.xlu0 %440, %v423
  %v442 = vpop.permute.xlu0 %441
  %445 = vset.pattern.permute.xlu0 0
  %446 = vperm.xlu0 %445, %v424
  %v447 = vpop.permute.xlu0 %446
  %450 = vset.pattern.permute.xlu0 0
  %451 = vperm.xlu0 %450, %v425
  %v452 = vpop.permute.xlu0 %451
  %455 = vset.pattern.permute.xlu0 0
  %456 = vperm.xlu0 %455, %v426
  %v457 = vpop.permute.xlu0 %456
  %460 = vset.pattern.permute.xlu0 0
  %461 = vperm.xlu0 %460, %v427
  %v462 = vpop.permute.xlu0 %461
  %465 = vset.pattern.permute.xlu0 0
  %466 = vperm.xlu0 %465, %v428
  %v467 = vpop.permute.xlu0 %466
  %470 = vset.pattern.permute.xlu0 0
  %471 = vperm.xlu0 %470, %v429
  %v472 = vpop.permute.xlu0 %471
  %475 = vset.pattern.permute.xlu0 0
  %476 = vperm.xlu0 %475, %v430
  %v477 = vpop.permute.xlu0 %476
  %480 = vset.pattern.permute.xlu0 0
  %481 = vperm.xlu0 %480, %v431
  %v482 = vpop.permute.xlu0 %481
  %485 = vset.pattern.permute.xlu0 0
  %486 = vperm.xlu0 %485, %v432
  %v487 = vpop.permute.xlu0 %486
  %490 = vset.pattern.permute.xlu0 0
  %491 = vperm.xlu0 %490, %v433
  %v492 = vpop.permute.xlu0 %491
  %495 = vset.pattern.permute.xlu0 0
  %496 = vperm.xlu0 %495, %v434
  %v497 = vpop.permute.xlu0 %496
  %500 = vset.pattern.permute.xlu0 0
  %501 = vperm.xlu0 %500, %v435
  %v502 = vpop.permute.xlu0 %501
  %505 = vset.pattern.permute.xlu0 0
  %506 = vperm.xlu0 %505, %v436
  %v507 = vpop.permute.xlu0 %506
  %510 = vset.pattern.permute.xlu0 0
  %511 = vperm.xlu0 %510, %v437
  %v512 = vpop.permute.xlu0 %511
  %515 = vset.pattern.permute.xlu0 0
  %516 = vperm.xlu0 %515, %v438
  %v517 = vpop.permute.xlu0 %516
  %v519 = vlaneseq
  %v520 = vshrl.u32 %v519, 7
  %v521 = vsub.s32 0, %v520
  %v522 = vrot.slane %v422, %v521
  %v523 = vmul.f32 %v442, %v522
  %v524 = vmul.f32 %v447, %v522
  %v525 = vmul.f32 %v452, %v522
  %v526 = vmul.f32 %v457, %v522
  %v527 = vmul.f32 %v462, %v522
  %v528 = vmul.f32 %v467, %v522
  %v529 = vmul.f32 %v472, %v522
  %v530 = vmul.f32 %v477, %v522
  %v531 = vmul.f32 %v482, %v522
  %v532 = vmul.f32 %v487, %v522
  %v533 = vmul.f32 %v492, %v522
  %v534 = vmul.f32 %v497, %v522
  %v535 = vmul.f32 %v502, %v522
  %v536 = vmul.f32 %v507, %v522
  %v537 = vmul.f32 %v512, %v522
  %v538 = vmul.f32 %v517, %v522
  %v539 = vadd.f32 %v339, %v523
  %v540 = vadd.f32 %v344, %v524
  %v541 = vadd.f32 %v349, %v525
  %v542 = vadd.f32 %v354, %v526
  %v543 = vadd.f32 %v359, %v527
  %v544 = vadd.f32 %v364, %v528
  %v545 = vadd.f32 %v369, %v529
  %v546 = vadd.f32 %v374, %v530
  %v547 = vadd.f32 %v379, %v531
  %v548 = vadd.f32 %v384, %v532
  %v549 = vadd.f32 %v389, %v533
  %v550 = vadd.f32 %v394, %v534
  %v551 = vadd.f32 %v399, %v535
  %v552 = vadd.f32 %v404, %v536
  %v553 = vadd.f32 %v409, %v537
  %v554 = vadd.f32 %v414, %v538
  %v555 = vxor.u32 %v539, 2147483648
  %v556 = vmul.f32 %v555, 1.442695
  %v557 = vpow.pop %v556
  %v558 = vadd.f32 %v557, 1.0
  %v559 = vrcp.pop %v558
  %v560 = vmul.f32 1.0, %v559
  %561 = vset.pattern.permute.xlu0 1
  %562 = vperm.xlu0 %561, %v423
  %v563 = vpop.permute.xlu0 %562
  %565 = vset.pattern.permute.xlu0 1
  %566 = vperm.xlu0 %565, %v424
  %v567 = vpop.permute.xlu0 %566
  %569 = vset.pattern.permute.xlu0 1
  %570 = vperm.xlu0 %569, %v425
  %v571 = vpop.permute.xlu0 %570
  %573 = vset.pattern.permute.xlu0 1
  %574 = vperm.xlu0 %573, %v426
  %v575 = vpop.permute.xlu0 %574
  %577 = vset.pattern.permute.xlu0 1
  %578 = vperm.xlu0 %577, %v427
  %v579 = vpop.permute.xlu0 %578
  %581 = vset.pattern.permute.xlu0 1
  %582 = vperm.xlu0 %581, %v428
  %v583 = vpop.permute.xlu0 %582
  %585 = vset.pattern.permute.xlu0 1
  %586 = vperm.xlu0 %585, %v429
  %v587 = vpop.permute.xlu0 %586
  %589 = vset.pattern.permute.xlu0 1
  %590 = vperm.xlu0 %589, %v430
  %v591 = vpop.permute.xlu0 %590
  %593 = vset.pattern.permute.xlu0 1
  %594 = vperm.xlu0 %593, %v431
  %v595 = vpop.permute.xlu0 %594
  %597 = vset.pattern.permute.xlu0 1
  %598 = vperm.xlu0 %597, %v432
  %v599 = vpop.permute.xlu0 %598
  %601 = vset.pattern.permute.xlu0 1
  %602 = vperm.xlu0 %601, %v433
  %v603 = vpop.permute.xlu0 %602
  %605 = vset.pattern.permute.xlu0 1
  %606 = vperm.xlu0 %605, %v434
  %v607 = vpop.permute.xlu0 %606
  %609 = vset.pattern.permute.xlu0 1
  %610 = vperm.xlu0 %609, %v435
  %v611 = vpop.permute.xlu0 %610
  %613 = vset.pattern.permute.xlu0 1
  %614 = vperm.xlu0 %613, %v436
  %v615 = vpop.permute.xlu0 %614
  %617 = vset.pattern.permute.xlu0 1
  %618 = vperm.xlu0 %617, %v437
  %v619 = vpop.permute.xlu0 %618
  %621 = vset.pattern.permute.xlu0 1
  %622 = vperm.xlu0 %621, %v438
  %v623 = vpop.permute.xlu0 %622
  %v625 = vlaneseq
  %v626 = vshrl.u32 %v625, 7
  %v627 = vsub.s32 1, %v626
  %v628 = vrot.slane %v560, %v627
  %v629 = vmul.f32 %v563, %v628
  %v630 = vmul.f32 %v567, %v628
  %v631 = vmul.f32 %v571, %v628
  %v632 = vmul.f32 %v575, %v628
  %v633 = vmul.f32 %v579, %v628
  %v634 = vmul.f32 %v583, %v628
  %v635 = vmul.f32 %v587, %v628
  %v636 = vmul.f32 %v591, %v628
  %v637 = vmul.f32 %v595, %v628
  %v638 = vmul.f32 %v599, %v628
  %v639 = vmul.f32 %v603, %v628
  %v640 = vmul.f32 %v607, %v628
  %v641 = vmul.f32 %v611, %v628
  %v642 = vmul.f32 %v615, %v628
  %v643 = vmul.f32 %v619, %v628
  %v644 = vmul.f32 %v623, %v628
  %v645 = vadd.f32 %v539, %v629
  %v646 = vadd.f32 %v540, %v630
  %v647 = vadd.f32 %v541, %v631
  %v648 = vadd.f32 %v542, %v632
  %v649 = vadd.f32 %v543, %v633
  %v650 = vadd.f32 %v544, %v634
  %v651 = vadd.f32 %v545, %v635
  %v652 = vadd.f32 %v546, %v636
  %v653 = vadd.f32 %v547, %v637
  %v654 = vadd.f32 %v548, %v638
  %v655 = vadd.f32 %v549, %v639
  %v656 = vadd.f32 %v550, %v640
  %v657 = vadd.f32 %v551, %v641
  %v658 = vadd.f32 %v552, %v642
  %v659 = vadd.f32 %v553, %v643
  %v660 = vadd.f32 %v554, %v644
  %v661 = vxor.u32 %v645, 2147483648
  %v662 = vmul.f32 %v661, 1.442695
  %v663 = vpow.pop %v662
  %v664 = vadd.f32 %v663, 1.0
  %v665 = vrcp.pop %v664
  %v666 = vmul.f32 1.0, %v665
  %667 = vset.pattern.permute.xlu0 2
  %668 = vperm.xlu0 %667, %v423
  %v669 = vpop.permute.xlu0 %668
  %671 = vset.pattern.permute.xlu0 2
  %672 = vperm.xlu0 %671, %v424
  %v673 = vpop.permute.xlu0 %672
  %675 = vset.pattern.permute.xlu0 2
  %676 = vperm.xlu0 %675, %v425
  %v677 = vpop.permute.xlu0 %676
  %679 = vset.pattern.permute.xlu0 2
  %680 = vperm.xlu0 %679, %v426
  %v681 = vpop.permute.xlu0 %680
  %683 = vset.pattern.permute.xlu0 2
  %684 = vperm.xlu0 %683, %v427
  %v685 = vpop.permute.xlu0 %684
  %687 = vset.pattern.permute.xlu0 2
  %688 = vperm.xlu0 %687, %v428
  %v689 = vpop.permute.xlu0 %688
  %691 = vset.pattern.permute.xlu0 2
  %692 = vperm.xlu0 %691, %v429
  %v693 = vpop.permute.xlu0 %692
  %695 = vset.pattern.permute.xlu0 2
  %696 = vperm.xlu0 %695, %v430
  %v697 = vpop.permute.xlu0 %696
  %699 = vset.pattern.permute.xlu0 2
  %700 = vperm.xlu0 %699, %v431
  %v701 = vpop.permute.xlu0 %700
  %703 = vset.pattern.permute.xlu0 2
  %704 = vperm.xlu0 %703, %v432
  %v705 = vpop.permute.xlu0 %704
  %707 = vset.pattern.permute.xlu0 2
  %708 = vperm.xlu0 %707, %v433
  %v709 = vpop.permute.xlu0 %708
  %711 = vset.pattern.permute.xlu0 2
  %712 = vperm.xlu0 %711, %v434
  %v713 = vpop.permute.xlu0 %712
  %715 = vset.pattern.permute.xlu0 2
  %716 = vperm.xlu0 %715, %v435
  %v717 = vpop.permute.xlu0 %716
  %719 = vset.pattern.permute.xlu0 2
  %720 = vperm.xlu0 %719, %v436
  %v721 = vpop.permute.xlu0 %720
  %723 = vset.pattern.permute.xlu0 2
  %724 = vperm.xlu0 %723, %v437
  %v725 = vpop.permute.xlu0 %724
  %727 = vset.pattern.permute.xlu0 2
  %728 = vperm.xlu0 %727, %v438
  %v729 = vpop.permute.xlu0 %728
  %v731 = vlaneseq
  %v732 = vshrl.u32 %v731, 7
  %v733 = vsub.s32 2, %v732
  %v734 = vrot.slane %v666, %v733
  %v735 = vmul.f32 %v669, %v734
  %v736 = vmul.f32 %v673, %v734
  %v737 = vmul.f32 %v677, %v734
  %v738 = vmul.f32 %v681, %v734
  %v739 = vmul.f32 %v685, %v734
  %v740 = vmul.f32 %v689, %v734
  %v741 = vmul.f32 %v693, %v734
  %v742 = vmul.f32 %v697, %v734
  %v743 = vmul.f32 %v701, %v734
  %v744 = vmul.f32 %v705, %v734
  %v745 = vmul.f32 %v709, %v734
  %v746 = vmul.f32 %v713, %v734
  %v747 = vmul.f32 %v717, %v734
  %v748 = vmul.f32 %v721, %v734
  %v749 = vmul.f32 %v725, %v734
  %v750 = vmul.f32 %v729, %v734
  %v751 = vadd.f32 %v645, %v735
  %v752 = vadd.f32 %v646, %v736
  %v753 = vadd.f32 %v647, %v737
  %v754 = vadd.f32 %v648, %v738
  %v755 = vadd.f32 %v649, %v739
  %v756 = vadd.f32 %v650, %v740
  %v757 = vadd.f32 %v651, %v741
  %v758 = vadd.f32 %v652, %v742
  %v759 = vadd.f32 %v653, %v743
  %v760 = vadd.f32 %v654, %v744
  %v761 = vadd.f32 %v655, %v745
  %v762 = vadd.f32 %v656, %v746
  %v763 = vadd.f32 %v657, %v747
  %v764 = vadd.f32 %v658, %v748
  %v765 = vadd.f32 %v659, %v749
  %v766 = vadd.f32 %v660, %v750
  %v767 = vxor.u32 %v751, 2147483648
  %v768 = vmul.f32 %v767, 1.442695
  %v769 = vpow.pop %v768
  %v770 = vadd.f32 %v769, 1.0
  %v771 = vrcp.pop %v770
  %v772 = vmul.f32 1.0, %v771
  %773 = vset.pattern.permute.xlu0 3
  %774 = vperm.xlu0 %773, %v423
  %v775 = vpop.permute.xlu0 %774
  %777 = vset.pattern.permute.xlu0 3
  %778 = vperm.xlu0 %777, %v424
  %v779 = vpop.permute.xlu0 %778
  %781 = vset.pattern.permute.xlu0 3
  %782 = vperm.xlu0 %781, %v425
  %v783 = vpop.permute.xlu0 %782
  %785 = vset.pattern.permute.xlu0 3
  %786 = vperm.xlu0 %785, %v426
  %v787 = vpop.permute.xlu0 %786
  %789 = vset.pattern.permute.xlu0 3
  %790 = vperm.xlu0 %789, %v427
  %v791 = vpop.permute.xlu0 %790
  %793 = vset.pattern.permute.xlu0 3
  %794 = vperm.xlu0 %793, %v428
  %v795 = vpop.permute.xlu0 %794
  %797 = vset.pattern.permute.xlu0 3
  %798 = vperm.xlu0 %797, %v429
  %v799 = vpop.permute.xlu0 %798
  %801 = vset.pattern.permute.xlu0 3
  %802 = vperm.xlu0 %801, %v430
  %v803 = vpop.permute.xlu0 %802
  %805 = vset.pattern.permute.xlu0 3
  %806 = vperm.xlu0 %805, %v431
  %v807 = vpop.permute.xlu0 %806
  %809 = vset.pattern.permute.xlu0 3
  %810 = vperm.xlu0 %809, %v432
  %v811 = vpop.permute.xlu0 %810
  %813 = vset.pattern.permute.xlu0 3
  %814 = vperm.xlu0 %813, %v433
  %v815 = vpop.permute.xlu0 %814
  %817 = vset.pattern.permute.xlu0 3
  %818 = vperm.xlu0 %817, %v434
  %v819 = vpop.permute.xlu0 %818
  %821 = vset.pattern.permute.xlu0 3
  %822 = vperm.xlu0 %821, %v435
  %v823 = vpop.permute.xlu0 %822
  %825 = vset.pattern.permute.xlu0 3
  %826 = vperm.xlu0 %825, %v436
  %v827 = vpop.permute.xlu0 %826
  %829 = vset.pattern.permute.xlu0 3
  %830 = vperm.xlu0 %829, %v437
  %v831 = vpop.permute.xlu0 %830
  %833 = vset.pattern.permute.xlu0 3
  %834 = vperm.xlu0 %833, %v438
  %v835 = vpop.permute.xlu0 %834
  %v837 = vlaneseq
  %v838 = vshrl.u32 %v837, 7
  %v839 = vsub.s32 3, %v838
  %v840 = vrot.slane %v772, %v839
  %v841 = vmul.f32 %v775, %v840
  %v842 = vmul.f32 %v779, %v840
  %v843 = vmul.f32 %v783, %v840
  %v844 = vmul.f32 %v787, %v840
  %v845 = vmul.f32 %v791, %v840
  %v846 = vmul.f32 %v795, %v840
  %v847 = vmul.f32 %v799, %v840
  %v848 = vmul.f32 %v803, %v840
  %v849 = vmul.f32 %v807, %v840
  %v850 = vmul.f32 %v811, %v840
  %v851 = vmul.f32 %v815, %v840
  %v852 = vmul.f32 %v819, %v840
  %v853 = vmul.f32 %v823, %v840
  %v854 = vmul.f32 %v827, %v840
  %v855 = vmul.f32 %v831, %v840
  %v856 = vmul.f32 %v835, %v840
  %v857 = vadd.f32 %v751, %v841
  %v858 = vadd.f32 %v752, %v842
  %v859 = vadd.f32 %v753, %v843
  %v860 = vadd.f32 %v754, %v844
  %v861 = vadd.f32 %v755, %v845
  %v862 = vadd.f32 %v756, %v846
  %v863 = vadd.f32 %v757, %v847
  %v864 = vadd.f32 %v758, %v848
  %v865 = vadd.f32 %v759, %v849
  %v866 = vadd.f32 %v760, %v850
  %v867 = vadd.f32 %v761, %v851
  %v868 = vadd.f32 %v762, %v852
  %v869 = vadd.f32 %v763, %v853
  %v870 = vadd.f32 %v764, %v854
  %v871 = vadd.f32 %v765, %v855
  %v872 = vadd.f32 %v766, %v856
  %v873 = vxor.u32 %v857, 2147483648
  %v874 = vmul.f32 %v873, 1.442695
  %v875 = vpow.pop %v874
  %v876 = vadd.f32 %v875, 1.0
  %v877 = vrcp.pop %v876
  %v878 = vmul.f32 1.0, %v877
  %879 = vset.pattern.permute.xlu0 4
  %880 = vperm.xlu0 %879, %v423
  %v881 = vpop.permute.xlu0 %880
  %883 = vset.pattern.permute.xlu0 4
  %884 = vperm.xlu0 %883, %v424
  %v885 = vpop.permute.xlu0 %884
  %887 = vset.pattern.permute.xlu0 4
  %888 = vperm.xlu0 %887, %v425
  %v889 = vpop.permute.xlu0 %888
  %891 = vset.pattern.permute.xlu0 4
  %892 = vperm.xlu0 %891, %v426
  %v893 = vpop.permute.xlu0 %892
  %895 = vset.pattern.permute.xlu0 4
  %896 = vperm.xlu0 %895, %v427
  %v897 = vpop.permute.xlu0 %896
  %899 = vset.pattern.permute.xlu0 4
  %900 = vperm.xlu0 %899, %v428
  %v901 = vpop.permute.xlu0 %900
  %903 = vset.pattern.permute.xlu0 4
  %904 = vperm.xlu0 %903, %v429
  %v905 = vpop.permute.xlu0 %904
  %907 = vset.pattern.permute.xlu0 4
  %908 = vperm.xlu0 %907, %v430
  %v909 = vpop.permute.xlu0 %908
  %911 = vset.pattern.permute.xlu0 4
  %912 = vperm.xlu0 %911, %v431
  %v913 = vpop.permute.xlu0 %912
  %915 = vset.pattern.permute.xlu0 4
  %916 = vperm.xlu0 %915, %v432
  %v917 = vpop.permute.xlu0 %916
  %919 = vset.pattern.permute.xlu0 4
  %920 = vperm.xlu0 %919, %v433
  %v921 = vpop.permute.xlu0 %920
  %923 = vset.pattern.permute.xlu0 4
  %924 = vperm.xlu0 %923, %v434
  %v925 = vpop.permute.xlu0 %924
  %927 = vset.pattern.permute.xlu0 4
  %928 = vperm.xlu0 %927, %v435
  %v929 = vpop.permute.xlu0 %928
  %931 = vset.pattern.permute.xlu0 4
  %932 = vperm.xlu0 %931, %v436
  %v933 = vpop.permute.xlu0 %932
  %935 = vset.pattern.permute.xlu0 4
  %936 = vperm.xlu0 %935, %v437
  %v937 = vpop.permute.xlu0 %936
  %939 = vset.pattern.permute.xlu0 4
  %940 = vperm.xlu0 %939, %v438
  %v941 = vpop.permute.xlu0 %940
  %v943 = vlaneseq
  %v944 = vshrl.u32 %v943, 7
  %v945 = vsub.s32 4, %v944
  %v946 = vrot.slane %v878, %v945
  %v947 = vmul.f32 %v881, %v946
  %v948 = vmul.f32 %v885, %v946
  %v949 = vmul.f32 %v889, %v946
  %v950 = vmul.f32 %v893, %v946
  %v951 = vmul.f32 %v897, %v946
  %v952 = vmul.f32 %v901, %v946
  %v953 = vmul.f32 %v905, %v946
  %v954 = vmul.f32 %v909, %v946
  %v955 = vmul.f32 %v913, %v946
  %v956 = vmul.f32 %v917, %v946
  %v957 = vmul.f32 %v921, %v946
  %v958 = vmul.f32 %v925, %v946
  %v959 = vmul.f32 %v929, %v946
  %v960 = vmul.f32 %v933, %v946
  %v961 = vmul.f32 %v937, %v946
  %v962 = vmul.f32 %v941, %v946
  %v963 = vadd.f32 %v857, %v947
  %v964 = vadd.f32 %v858, %v948
  %v965 = vadd.f32 %v859, %v949
  %v966 = vadd.f32 %v860, %v950
  %v967 = vadd.f32 %v861, %v951
  %v968 = vadd.f32 %v862, %v952
  %v969 = vadd.f32 %v863, %v953
  %v970 = vadd.f32 %v864, %v954
  %v971 = vadd.f32 %v865, %v955
  %v972 = vadd.f32 %v866, %v956
  %v973 = vadd.f32 %v867, %v957
  %v974 = vadd.f32 %v868, %v958
  %v975 = vadd.f32 %v869, %v959
  %v976 = vadd.f32 %v870, %v960
  %v977 = vadd.f32 %v871, %v961
  %v978 = vadd.f32 %v872, %v962
  %v979 = vxor.u32 %v963, 2147483648
  %v980 = vmul.f32 %v979, 1.442695
  %v981 = vpow.pop %v980
  %v982 = vadd.f32 %v981, 1.0
  %v983 = vrcp.pop %v982
  %v984 = vmul.f32 1.0, %v983
  %985 = vset.pattern.permute.xlu0 5
  %986 = vperm.xlu0 %985, %v423
  %v987 = vpop.permute.xlu0 %986
  %989 = vset.pattern.permute.xlu0 5
  %990 = vperm.xlu0 %989, %v424
  %v991 = vpop.permute.xlu0 %990
  %993 = vset.pattern.permute.xlu0 5
  %994 = vperm.xlu0 %993, %v425
  %v995 = vpop.permute.xlu0 %994
  %997 = vset.pattern.permute.xlu0 5
  %998 = vperm.xlu0 %997, %v426
  %v999 = vpop.permute.xlu0 %998
  %1001 = vset.pattern.permute.xlu0 5
  %1002 = vperm.xlu0 %1001, %v427
  %v1003 = vpop.permute.xlu0 %1002
  %1005 = vset.pattern.permute.xlu0 5
  %1006 = vperm.xlu0 %1005, %v428
  %v1007 = vpop.permute.xlu0 %1006
  %1009 = vset.pattern.permute.xlu0 5
  %1010 = vperm.xlu0 %1009, %v429
  %v1011 = vpop.permute.xlu0 %1010
  %1013 = vset.pattern.permute.xlu0 5
  %1014 = vperm.xlu0 %1013, %v430
  %v1015 = vpop.permute.xlu0 %1014
  %1017 = vset.pattern.permute.xlu0 5
  %1018 = vperm.xlu0 %1017, %v431
  %v1019 = vpop.permute.xlu0 %1018
  %1021 = vset.pattern.permute.xlu0 5
  %1022 = vperm.xlu0 %1021, %v432
  %v1023 = vpop.permute.xlu0 %1022
  %1025 = vset.pattern.permute.xlu0 5
  %1026 = vperm.xlu0 %1025, %v433
  %v1027 = vpop.permute.xlu0 %1026
  %1029 = vset.pattern.permute.xlu0 5
  %1030 = vperm.xlu0 %1029, %v434
  %v1031 = vpop.permute.xlu0 %1030
  %1033 = vset.pattern.permute.xlu0 5
  %1034 = vperm.xlu0 %1033, %v435
  %v1035 = vpop.permute.xlu0 %1034
  %1037 = vset.pattern.permute.xlu0 5
  %1038 = vperm.xlu0 %1037, %v436
  %v1039 = vpop.permute.xlu0 %1038
  %1041 = vset.pattern.permute.xlu0 5
  %1042 = vperm.xlu0 %1041, %v437
  %v1043 = vpop.permute.xlu0 %1042
  %1045 = vset.pattern.permute.xlu0 5
  %1046 = vperm.xlu0 %1045, %v438
  %v1047 = vpop.permute.xlu0 %1046
  %v1049 = vlaneseq
  %v1050 = vshrl.u32 %v1049, 7
  %v1051 = vsub.s32 5, %v1050
  %v1052 = vrot.slane %v984, %v1051
  %v1053 = vmul.f32 %v987, %v1052
  %v1054 = vmul.f32 %v991, %v1052
  %v1055 = vmul.f32 %v995, %v1052
  %v1056 = vmul.f32 %v999, %v1052
  %v1057 = vmul.f32 %v1003, %v1052
  %v1058 = vmul.f32 %v1007, %v1052
  %v1059 = vmul.f32 %v1011, %v1052
  %v1060 = vmul.f32 %v1015, %v1052
  %v1061 = vmul.f32 %v1019, %v1052
  %v1062 = vmul.f32 %v1023, %v1052
  %v1063 = vmul.f32 %v1027, %v1052
  %v1064 = vmul.f32 %v1031, %v1052
  %v1065 = vmul.f32 %v1035, %v1052
  %v1066 = vmul.f32 %v1039, %v1052
  %v1067 = vmul.f32 %v1043, %v1052
  %v1068 = vmul.f32 %v1047, %v1052
  %v1069 = vadd.f32 %v963, %v1053
  %v1070 = vadd.f32 %v964, %v1054
  %v1071 = vadd.f32 %v965, %v1055
  %v1072 = vadd.f32 %v966, %v1056
  %v1073 = vadd.f32 %v967, %v1057
  %v1074 = vadd.f32 %v968, %v1058
  %v1075 = vadd.f32 %v969, %v1059
  %v1076 = vadd.f32 %v970, %v1060
  %v1077 = vadd.f32 %v971, %v1061
  %v1078 = vadd.f32 %v972, %v1062
  %v1079 = vadd.f32 %v973, %v1063
  %v1080 = vadd.f32 %v974, %v1064
  %v1081 = vadd.f32 %v975, %v1065
  %v1082 = vadd.f32 %v976, %v1066
  %v1083 = vadd.f32 %v977, %v1067
  %v1084 = vadd.f32 %v978, %v1068
  %v1085 = vxor.u32 %v1069, 2147483648
  %v1086 = vmul.f32 %v1085, 1.442695
  %v1087 = vpow.pop %v1086
  %v1088 = vadd.f32 %v1087, 1.0
  %v1089 = vrcp.pop %v1088
  %v1090 = vmul.f32 1.0, %v1089
  %1091 = vset.pattern.permute.xlu0 6
  %1092 = vperm.xlu0 %1091, %v423
  %v1093 = vpop.permute.xlu0 %1092
  %1095 = vset.pattern.permute.xlu0 6
  %1096 = vperm.xlu0 %1095, %v424
  %v1097 = vpop.permute.xlu0 %1096
  %1099 = vset.pattern.permute.xlu0 6
  %1100 = vperm.xlu0 %1099, %v425
  %v1101 = vpop.permute.xlu0 %1100
  %1103 = vset.pattern.permute.xlu0 6
  %1104 = vperm.xlu0 %1103, %v426
  %v1105 = vpop.permute.xlu0 %1104
  %1107 = vset.pattern.permute.xlu0 6
  %1108 = vperm.xlu0 %1107, %v427
  %v1109 = vpop.permute.xlu0 %1108
  %1111 = vset.pattern.permute.xlu0 6
  %1112 = vperm.xlu0 %1111, %v428
  %v1113 = vpop.permute.xlu0 %1112
  %1115 = vset.pattern.permute.xlu0 6
  %1116 = vperm.xlu0 %1115, %v429
  %v1117 = vpop.permute.xlu0 %1116
  %1119 = vset.pattern.permute.xlu0 6
  %1120 = vperm.xlu0 %1119, %v430
  %v1121 = vpop.permute.xlu0 %1120
  %1123 = vset.pattern.permute.xlu0 6
  %1124 = vperm.xlu0 %1123, %v431
  %v1125 = vpop.permute.xlu0 %1124
  %1127 = vset.pattern.permute.xlu0 6
  %1128 = vperm.xlu0 %1127, %v432
  %v1129 = vpop.permute.xlu0 %1128
  %1131 = vset.pattern.permute.xlu0 6
  %1132 = vperm.xlu0 %1131, %v433
  %v1133 = vpop.permute.xlu0 %1132
  %1135 = vset.pattern.permute.xlu0 6
  %1136 = vperm.xlu0 %1135, %v434
  %v1137 = vpop.permute.xlu0 %1136
  %1139 = vset.pattern.permute.xlu0 6
  %1140 = vperm.xlu0 %1139, %v435
  %v1141 = vpop.permute.xlu0 %1140
  %1143 = vset.pattern.permute.xlu0 6
  %1144 = vperm.xlu0 %1143, %v436
  %v1145 = vpop.permute.xlu0 %1144
  %1147 = vset.pattern.permute.xlu0 6
  %1148 = vperm.xlu0 %1147, %v437
  %v1149 = vpop.permute.xlu0 %1148
  %1151 = vset.pattern.permute.xlu0 6
  %1152 = vperm.xlu0 %1151, %v438
  %v1153 = vpop.permute.xlu0 %1152
  %v1155 = vlaneseq
  %v1156 = vshrl.u32 %v1155, 7
  %v1157 = vsub.s32 6, %v1156
  %v1158 = vrot.slane %v1090, %v1157
  %v1159 = vmul.f32 %v1093, %v1158
  %v1160 = vmul.f32 %v1097, %v1158
  %v1161 = vmul.f32 %v1101, %v1158
  %v1162 = vmul.f32 %v1105, %v1158
  %v1163 = vmul.f32 %v1109, %v1158
  %v1164 = vmul.f32 %v1113, %v1158
  %v1165 = vmul.f32 %v1117, %v1158
  %v1166 = vmul.f32 %v1121, %v1158
  %v1167 = vmul.f32 %v1125, %v1158
  %v1168 = vmul.f32 %v1129, %v1158
  %v1169 = vmul.f32 %v1133, %v1158
  %v1170 = vmul.f32 %v1137, %v1158
  %v1171 = vmul.f32 %v1141, %v1158
  %v1172 = vmul.f32 %v1145, %v1158
  %v1173 = vmul.f32 %v1149, %v1158
  %v1174 = vmul.f32 %v1153, %v1158
  %v1175 = vadd.f32 %v1069, %v1159
  %v1176 = vadd.f32 %v1070, %v1160
  %v1177 = vadd.f32 %v1071, %v1161
  %v1178 = vadd.f32 %v1072, %v1162
  %v1179 = vadd.f32 %v1073, %v1163
  %v1180 = vadd.f32 %v1074, %v1164
  %v1181 = vadd.f32 %v1075, %v1165
  %v1182 = vadd.f32 %v1076, %v1166
  %v1183 = vadd.f32 %v1077, %v1167
  %v1184 = vadd.f32 %v1078, %v1168
  %v1185 = vadd.f32 %v1079, %v1169
  %v1186 = vadd.f32 %v1080, %v1170
  %v1187 = vadd.f32 %v1081, %v1171
  %v1188 = vadd.f32 %v1082, %v1172
  %v1189 = vadd.f32 %v1083, %v1173
  %v1190 = vadd.f32 %v1084, %v1174
  %vm1191 = vcmask 64512
  %1192 = vst.msk [vmem:[%s6] sm:$0xff] %vm1191, %v1175
  %1193 = vst.msk [vmem:[%s6 + $0x8] sm:$0xff] %vm1191, %v1176
  %1194 = vst.msk [vmem:[%s6 + $0x10] sm:$0xff] %vm1191, %v1177
  %1195 = vst.msk [vmem:[%s6 + $0x18] sm:$0xff] %vm1191, %v1178
  %1196 = vst.msk [vmem:[%s6 + $0x20] sm:$0xff] %vm1191, %v1179
  %1197 = vst.msk [vmem:[%s6 + $0x28] sm:$0xff] %vm1191, %v1180
  %1198 = vst.msk [vmem:[%s6 + $0x30] sm:$0xff] %vm1191, %v1181
  %1199 = vst.msk [vmem:[%s6 + $0x38] sm:$0xff] %vm1191, %v1182
  %1200 = vst.msk [vmem:[%s6 + $0x40] sm:$0xff] %vm1191, %v1183
  %1201 = vst.msk [vmem:[%s6 + $0x48] sm:$0xff] %vm1191, %v1184
  %1202 = vst.msk [vmem:[%s6 + $0x50] sm:$0xff] %vm1191, %v1185
  %1203 = vst.msk [vmem:[%s6 + $0x58] sm:$0xff] %vm1191, %v1186
  %1204 = vst.msk [vmem:[%s6 + $0x60] sm:$0xff] %vm1191, %v1187
  %1205 = vst.msk [vmem:[%s6 + $0x68] sm:$0xff] %vm1191, %v1188
  %1206 = vst.msk [vmem:[%s6 + $0x70] sm:$0xff] %vm1191, %v1189
  %1207 = vst.msk [vmem:[%s6 + $0x78] sm:$0xff] %vm1191, %v1190
  // Predicated region
  $region26: #{tpu_custom_call.1} parent=0 // pred_check
    _
  $region27: #{tpu_custom_call.1} parent=0 // pred_check_branch
    %1209 = sbr.rel (0) target = $region29
  $region28: #{tpu_custom_call.1} parent=0 // pred_region
    _
  $region29: #{tpu_custom_call.1} parent=0 // pred_fallthru
    _
  // Predicated region
  $region30: #{tpu_custom_call.1} parent=0 // pred_check
    _
  $region31: #{tpu_custom_call.1} parent=0 // pred_check_branch
    %1211 = sbr.rel (0) target = $region33
  $region32: #{tpu_custom_call.1} parent=0 // pred_region
    _
  $region33: #{tpu_custom_call.1} parent=0 // pred_fallthru
    _

</llo_original>
